<compile_context>
chip_gen: v7x
topology: tpu7x:2x2x1
jax: 0.10.0
libtpu: 0.0.40
codegen_flags: <defaults>
</compile_context>

<pallas_src>
import functools

import numpy as np
import jax
import jax.numpy as jnp
from jax.experimental import pallas as pl
from jax.experimental.pallas import tpu as pltpu


def _build_upsample_matrix(H, W, K, padding, dtype):
    """0/1 matrix that maps the flat (H*W) image to the flat, 2x-nearest-upsampled,
    H-padded image (row-major, row length W_out=2W), with `padding` extra zero lanes
    on each end so every conv tap is a pure lane shift of the result."""
    H_up, W_out = 2 * H, 2 * W               # requires 2*padding == K - 1
    L = (H_up + 2 * padding) * W_out
    L_ext = L + 2 * padding
    m = np.zeros((H * W, L_ext), dtype=np.float32)
    for a in range(H_up + 2 * padding):       # upsampled row index (incl. H padding)
        r = a - padding
        if not (0 <= r < H_up):
            continue                          # zero padding row
        h = r // 2                            # nearest-neighbor source row
        for b in range(W_out):
            w = b // 2                        # nearest-neighbor source col
            m[h * W + w, padding + a * W_out + b] = 1.0
    return jnp.asarray(m, dtype=dtype)


def _upsample_conv_kernel(x_ref, m_ref, w_ref, b_ref, o_ref, *, K, W_out, n_pix, padding):
    """Fused nearest-2x upsample + KxK conv (stride 1) for one image.

    x_ref: (1, C_in, H*W)       bf16 original image, spatial flattened on lanes
    m_ref: (H*W, L_ext)         bf16 constant selection matrix (upsample + H-pad + flatten)
    w_ref: (C_out, K*K*C_in)    bf16 conv weights, contraction ordered (kh, kw, ci)
    b_ref: (C_out, 1)           f32 bias
    o_ref: (1, C_out, n_pix)    output, pixel p = oh*W_out + ow on the lane axis
    """
    x = x_ref[0]                                                     # (C_in, H*W)

    # Upsample + H-pad + row-major flatten in one MXU matmul (exact 0/1 selection).
    z = jnp.dot(x, m_ref[...], preferred_element_type=jnp.float32)   # (C_in, L_ext)
    z = z.astype(jnp.bfloat16)

    # im2col: tap (kh, kw) of output pixel p reads flat index p + kh*W_out + kw.
    # Columns that "wrap" between image rows are exactly the W zero-padding -> mask.
    ow = jax.lax.broadcasted_iota(jnp.int32, (1, n_pix), 1) % W_out   # output column
    taps = []
    for kh in range(K):
        for kw in range(K):
            start = kh * W_out + kw
            t = z[:, start:start + n_pix]                             # (C_in, n_pix)
            lo, hi = padding - kw, W_out + padding - kw               # valid ow range
            if lo > 0 or hi < W_out:
                t = jnp.where((ow >= lo) & (ow < hi), t, 0)
            taps.append(t)
    patches = jnp.concatenate(taps, axis=0)                           # (K*K*C_in, n_pix)

    # Single fat matmul: (C_out, K*K*C_in) @ (K*K*C_in, n_pix), f32 accumulation.
    acc = jnp.dot(w_ref[...], patches, preferred_element_type=jnp.float32)
    acc = acc + b_ref[...]                                            # bias broadcast
    o_ref[0] = acc.astype(o_ref.dtype)                                # lane-dense store


def upsample_conv(x_nchw, weight_oihw, bias, *, stride=1, padding=1):
    """Forward pass of UpsampleConv: nearest 2x upsample then Conv2d(+bias).

    x_nchw:      (N, C_in, H, W)
    weight_oihw: (C_out, C_in, K, K)   (PyTorch layout)
    bias:        (C_out,)
    returns:     (N, C_out, 2H, 2W)
    """
    N, C_in, H, W = x_nchw.shape
    C_out, C_in_w, KH, KW = weight_oihw.shape
    assert C_in_w == C_in, (C_in_w, C_in)
    assert KH == KW, "only square kernels are implemented"
    K = KH
    assert stride == 1, "only stride=1 is implemented"
    assert 2 * padding == K - 1, "only 'same'-style padding (2*padding == K-1) is implemented"

    H_out, W_out = 2 * H, 2 * W
    n_pix = H_out * W_out
    cdt = jnp.bfloat16                      # MXU feed dtype; accumulation stays f32

    # --- wrapper-side glue: only free reshapes / tiny constant prep (no HBM blow-up) ---
    x_flat = x_nchw.reshape(N, C_in, H * W).astype(cdt)               # free reshape
    m = _build_upsample_matrix(H, W, K, padding, cdt)                 # (H*W, L_ext)
    L_ext = m.shape[1]
    # OIHW -> (C_out, K*K*C_in) with contraction ordered (kh, kw, ci) to match im2col.
    w_mat = jnp.transpose(weight_oihw, (0, 2, 3, 1)).reshape(C_out, K * K * C_in).astype(cdt)
    b2d = bias.reshape(C_out, 1).astype(jnp.float32)

    kernel = functools.partial(_upsample_conv_kernel, K=K, W_out=W_out,
                               n_pix=n_pix, padding=padding)

    # VMEM budget: double-buffered per-image blocks + resident constants + temporaries.
    out_itemsize = jnp.dtype(x_nchw.dtype).itemsize
    vmem_bytes = (
        2 * (C_in * H * W * 2)                      # input block (bf16), double-buffered
        + 2 * (C_out * n_pix * out_itemsize)        # output block, double-buffered
        + H * W * L_ext * 2                         # selection matrix (resident)
        + C_out * K * K * C_in * 2 + C_out * 4      # weights + bias
        + (K * K * C_in + C_out) * n_pix * 4        # im2col patches + f32 accumulator
    )
    vmem_limit = int(max(2 * vmem_bytes, 8 * 1024 * 1024))

    out_flat = pl.pallas_call(
        kernel,
        out_shape=jax.ShapeDtypeStruct((N, C_out, n_pix), x_nchw.dtype),
        grid_spec=pltpu.PrefetchScalarGridSpec(
            num_scalar_prefetch=0,
            grid=(N,),
            in_specs=[
                pl.BlockSpec((1, C_in, H * W), lambda n: (n, 0, 0)),
                pl.BlockSpec((H * W, L_ext), lambda n: (0, 0)),         # constant, stays resident
                pl.BlockSpec((C_out, K * K * C_in), lambda n: (0, 0)),
                pl.BlockSpec((C_out, 1), lambda n: (0, 0)),
            ],
            out_specs=pl.BlockSpec((1, C_out, n_pix), lambda n: (n, 0, 0)),
        ),
        compiler_params=pltpu.CompilerParams(
            dimension_semantics=("parallel",),
            vmem_limit_bytes=vmem_limit,
        ),
    )(x_flat, m, w_mat, b2d)

    # Already channels-first; splitting the flat pixel axis is a free reshape.
    return out_flat.reshape(N, C_out, H_out, W_out)


if __name__ == "__main__":
    key = jax.random.PRNGKey(0)
    k_x, k_w, k_b = jax.random.split(key, 3)

    # UpsampleConv(in_channels=4, out_channels=8, kernel_size=3, stride=1, padding=1)
    N, C_in, H, W = 2, 4, 16, 16
    C_out, K = 8, 3

    x = jax.random.normal(k_x, (N, C_in, H, W), dtype=jnp.float32)
    weight = jax.random.normal(k_w, (C_out, C_in, K, K), dtype=jnp.float32) * 0.1
    bias = jax.random.normal(k_b, (C_out,), dtype=jnp.float32) * 0.1

    out = upsample_conv(x, weight, bias, stride=1, padding=1)
    out = jax.block_until_ready(out)

    # Reference (pure JAX): nearest 2x upsample + conv, on the same bf16-rounded operands
    # (the kernel feeds the MXU in bf16 and accumulates in f32).
    xr = x.astype(jnp.bfloat16).astype(jnp.float32)
    wr = weight.astype(jnp.bfloat16).astype(jnp.float32)
    x_up = jnp.repeat(jnp.repeat(xr, 2, axis=2), 2, axis=3)
    ref = jax.lax.conv_general_dilated(
        x_up, wr, window_strides=(1, 1), padding=((1, 1), (1, 1)),
        dimension_numbers=("NCHW", "OIHW", "NCHW"))
    ref = ref + bias[None, :, None, None]

    assert out.shape == (N, C_out, 2 * H, 2 * W), out.shape
    err = float(jnp.max(jnp.abs(out - ref)))
    assert jnp.allclose(out, ref, atol=1e-2, rtol=1e-2), err

    print("KERNEL_OK")
</pallas_src>

<mosaic_0001>
module attributes {stable_mosaic.version = 11 : i64} {
  func.func @_upsample_conv_kernel(%arg0: i32, %arg1: memref<1x4x256xbf16, #tpu.memory_space<vmem>>, %arg2: memref<256x1090xbf16, #tpu.memory_space<vmem>>, %arg3: memref<8x36xbf16, #tpu.memory_space<vmem>>, %arg4: memref<8x1xf32, #tpu.memory_space<vmem>>, %arg5: memref<1x8x1024xf32, #tpu.memory_space<vmem>>) attributes {dimension_semantics = [#tpu.dimension_semantics<parallel>], iteration_bounds = array<i64: 2>, scalar_prefetch = 0 : i64, scratch_operands = 0 : i64, tpu.core_type = #tpu.core_type<tc>, window_params = [{transform_indices = @transform_0, window_bounds = array<i64: 1, 4, 256>}, {pipeline_mode = #tpu.pipeline_mode<synchronous>, transform_indices = @transform_1, window_bounds = array<i64: 256, 1090>}, {pipeline_mode = #tpu.pipeline_mode<synchronous>, transform_indices = @transform_2, window_bounds = array<i64: 8, 36>}, {pipeline_mode = #tpu.pipeline_mode<synchronous>, transform_indices = @transform_3, window_bounds = array<i64: 8, 1>}, {transform_indices = @transform_4, window_bounds = array<i64: 1, 8, 1024>}]} {
    %c0 = arith.constant 0 : index
    %c0_0 = arith.constant 0 : index
    %c0_1 = arith.constant 0 : index
    %0 = vector.load %arg1[%c0, %c0_0, %c0_1] : memref<1x4x256xbf16, #tpu.memory_space<vmem>>, vector<1x4x256xbf16>
    %1 = vector.shape_cast %0 : vector<1x4x256xbf16> to vector<4x256xbf16>
    %c0_2 = arith.constant 0 : index
    %c0_3 = arith.constant 0 : index
    %2 = vector.load %arg2[%c0_2, %c0_3] : memref<256x1090xbf16, #tpu.memory_space<vmem>>, vector<256x1090xbf16>
    %cst = arith.constant dense<0.000000e+00> : vector<4x1090xf32>
    %3 = tpu.matmul %1, %2, %cst {dimension_numbers = #tpu.dot_dimension_numbers<[1], [0], [0], [1], [0, 0, 1, 1], [], []>} : vector<4x256xbf16>, vector<256x1090xbf16>, vector<4x1090xf32> -> vector<4x1090xf32>
    %4 = arith.truncf %3 : vector<4x1090xf32> to vector<4x1090xbf16>
    %5 = tpu.iota {dimensions = array<i32: 1>} : vector<1x1024xi32>
    %c32_i32 = arith.constant 32 : i32
    %c0_i32 = arith.constant 0 : i32
    %6 = arith.cmpi eq, %c32_i32, %c0_i32 : i32
    %c1_i32 = arith.constant 1 : i32
    %7 = arith.select %6, %c1_i32, %c32_i32 : i32
    %8 = vector.broadcast %7 : i32 to vector<1x1024xi32>
    %9 = arith.remsi %5, %8 : vector<1x1024xi32>
    %c0_i32_4 = arith.constant 0 : i32
    %10 = vector.broadcast %c0_i32_4 : i32 to vector<1x1024xi32>
    %11 = arith.cmpi ne, %9, %10 : vector<1x1024xi32>
    %c0_i32_5 = arith.constant 0 : i32
    %12 = vector.broadcast %c0_i32_5 : i32 to vector<1x1024xi32>
    %13 = arith.cmpi slt, %9, %12 : vector<1x1024xi32>
    %c0_i32_6 = arith.constant 0 : i32
    %14 = arith.cmpi slt, %7, %c0_i32_6 : i32
    %15 = vector.broadcast %14 : i1 to vector<1x1024xi1>
    %16 = vector.broadcast %15 : vector<1x1024xi1> to vector<1x1024xi1>
    %17 = arith.xori %13, %16 : vector<1x1024xi1>
    %18 = arith.andi %17, %11 : vector<1x1024xi1>
    %19 = vector.broadcast %7 : i32 to vector<1x1024xi32>
    %20 = arith.addi %9, %19 : vector<1x1024xi32>
    %21 = arith.select %18, %20, %9 : vector<1x1024xi1>, vector<1x1024xi32>
    %22 = vector.extract_strided_slice %4 {offsets = [0, 0], sizes = [4, 1024], strides = [1, 1]} : vector<4x1090xbf16> to vector<4x1024xbf16>
    %c1_i32_7 = arith.constant 1 : i32
    %23 = vector.broadcast %c1_i32_7 : i32 to vector<1x1024xi32>
    %24 = arith.cmpi sge, %21, %23 : vector<1x1024xi32>
    %c33_i32 = arith.constant 33 : i32
    %25 = vector.broadcast %c33_i32 : i32 to vector<1x1024xi32>
    %26 = arith.cmpi slt, %21, %25 : vector<1x1024xi32>
    %27 = arith.andi %24, %26 : vector<1x1024xi1>
    %c0_i32_8 = arith.constant 0 : i32
    %28 = arith.sitofp %c0_i32_8 : i32 to bf16
    %29 = vector.shape_cast %27 : vector<1x1024xi1> to vector<1x1024xi1>
    %30 = vector.broadcast %29 : vector<1x1024xi1> to vector<4x1024xi1>
    %31 = vector.broadcast %28 : bf16 to vector<4x1024xbf16>
    %32 = arith.select %30, %22, %31 : vector<4x1024xi1>, vector<4x1024xbf16>
    %33 = vector.extract_strided_slice %4 {offsets = [0, 1], sizes = [4, 1024], strides = [1, 1]} : vector<4x1090xbf16> to vector<4x1024xbf16>
    %34 = vector.extract_strided_slice %4 {offsets = [0, 2], sizes = [4, 1024], strides = [1, 1]} : vector<4x1090xbf16> to vector<4x1024xbf16>
    %c-1_i32 = arith.constant -1 : i32
    %35 = vector.broadcast %c-1_i32 : i32 to vector<1x1024xi32>
    %36 = arith.cmpi sge, %21, %35 : vector<1x1024xi32>
    %c31_i32 = arith.constant 31 : i32
    %37 = vector.broadcast %c31_i32 : i32 to vector<1x1024xi32>
    %38 = arith.cmpi slt, %21, %37 : vector<1x1024xi32>
    %39 = arith.andi %36, %38 : vector<1x1024xi1>
    %c0_i32_9 = arith.constant 0 : i32
    %40 = arith.sitofp %c0_i32_9 : i32 to bf16
    %41 = vector.shape_cast %39 : vector<1x1024xi1> to vector<1x1024xi1>
    %42 = vector.broadcast %41 : vector<1x1024xi1> to vector<4x1024xi1>
    %43 = vector.broadcast %40 : bf16 to vector<4x1024xbf16>
    %44 = arith.select %42, %34, %43 : vector<4x1024xi1>, vector<4x1024xbf16>
    %45 = vector.extract_strided_slice %4 {offsets = [0, 32], sizes = [4, 1024], strides = [1, 1]} : vector<4x1090xbf16> to vector<4x1024xbf16>
    %c1_i32_10 = arith.constant 1 : i32
    %46 = vector.broadcast %c1_i32_10 : i32 to vector<1x1024xi32>
    %47 = arith.cmpi sge, %21, %46 : vector<1x1024xi32>
    %c33_i32_11 = arith.constant 33 : i32
    %48 = vector.broadcast %c33_i32_11 : i32 to vector<1x1024xi32>
    %49 = arith.cmpi slt, %21, %48 : vector<1x1024xi32>
    %50 = arith.andi %47, %49 : vector<1x1024xi1>
    %c0_i32_12 = arith.constant 0 : i32
    %51 = arith.sitofp %c0_i32_12 : i32 to bf16
    %52 = vector.shape_cast %50 : vector<1x1024xi1> to vector<1x1024xi1>
    %53 = vector.broadcast %52 : vector<1x1024xi1> to vector<4x1024xi1>
    %54 = vector.broadcast %51 : bf16 to vector<4x1024xbf16>
    %55 = arith.select %53, %45, %54 : vector<4x1024xi1>, vector<4x1024xbf16>
    %56 = vector.extract_strided_slice %4 {offsets = [0, 33], sizes = [4, 1024], strides = [1, 1]} : vector<4x1090xbf16> to vector<4x1024xbf16>
    %57 = vector.extract_strided_slice %4 {offsets = [0, 34], sizes = [4, 1024], strides = [1, 1]} : vector<4x1090xbf16> to vector<4x1024xbf16>
    %c-1_i32_13 = arith.constant -1 : i32
    %58 = vector.broadcast %c-1_i32_13 : i32 to vector<1x1024xi32>
    %59 = arith.cmpi sge, %21, %58 : vector<1x1024xi32>
    %c31_i32_14 = arith.constant 31 : i32
    %60 = vector.broadcast %c31_i32_14 : i32 to vector<1x1024xi32>
    %61 = arith.cmpi slt, %21, %60 : vector<1x1024xi32>
    %62 = arith.andi %59, %61 : vector<1x1024xi1>
    %c0_i32_15 = arith.constant 0 : i32
    %63 = arith.sitofp %c0_i32_15 : i32 to bf16
    %64 = vector.shape_cast %62 : vector<1x1024xi1> to vector<1x1024xi1>
    %65 = vector.broadcast %64 : vector<1x1024xi1> to vector<4x1024xi1>
    %66 = vector.broadcast %63 : bf16 to vector<4x1024xbf16>
    %67 = arith.select %65, %57, %66 : vector<4x1024xi1>, vector<4x1024xbf16>
    %68 = vector.extract_strided_slice %4 {offsets = [0, 64], sizes = [4, 1024], strides = [1, 1]} : vector<4x1090xbf16> to vector<4x1024xbf16>
    %c1_i32_16 = arith.constant 1 : i32
    %69 = vector.broadcast %c1_i32_16 : i32 to vector<1x1024xi32>
    %70 = arith.cmpi sge, %21, %69 : vector<1x1024xi32>
    %c33_i32_17 = arith.constant 33 : i32
    %71 = vector.broadcast %c33_i32_17 : i32 to vector<1x1024xi32>
    %72 = arith.cmpi slt, %21, %71 : vector<1x1024xi32>
    %73 = arith.andi %70, %72 : vector<1x1024xi1>
    %c0_i32_18 = arith.constant 0 : i32
    %74 = arith.sitofp %c0_i32_18 : i32 to bf16
    %75 = vector.shape_cast %73 : vector<1x1024xi1> to vector<1x1024xi1>
    %76 = vector.broadcast %75 : vector<1x1024xi1> to vector<4x1024xi1>
    %77 = vector.broadcast %74 : bf16 to vector<4x1024xbf16>
    %78 = arith.select %76, %68, %77 : vector<4x1024xi1>, vector<4x1024xbf16>
    %79 = vector.extract_strided_slice %4 {offsets = [0, 65], sizes = [4, 1024], strides = [1, 1]} : vector<4x1090xbf16> to vector<4x1024xbf16>
    %80 = vector.extract_strided_slice %4 {offsets = [0, 66], sizes = [4, 1024], strides = [1, 1]} : vector<4x1090xbf16> to vector<4x1024xbf16>
    %c-1_i32_19 = arith.constant -1 : i32
    %81 = vector.broadcast %c-1_i32_19 : i32 to vector<1x1024xi32>
    %82 = arith.cmpi sge, %21, %81 : vector<1x1024xi32>
    %c31_i32_20 = arith.constant 31 : i32
    %83 = vector.broadcast %c31_i32_20 : i32 to vector<1x1024xi32>
    %84 = arith.cmpi slt, %21, %83 : vector<1x1024xi32>
    %85 = arith.andi %82, %84 : vector<1x1024xi1>
    %c0_i32_21 = arith.constant 0 : i32
    %86 = arith.sitofp %c0_i32_21 : i32 to bf16
    %87 = vector.shape_cast %85 : vector<1x1024xi1> to vector<1x1024xi1>
    %88 = vector.broadcast %87 : vector<1x1024xi1> to vector<4x1024xi1>
    %89 = vector.broadcast %86 : bf16 to vector<4x1024xbf16>
    %90 = arith.select %88, %80, %89 : vector<4x1024xi1>, vector<4x1024xbf16>
    %91 = tpu.concatenate %32, %33, %44, %55, %56, %67, %78, %79, %90 in 0 : vector<4x1024xbf16>, vector<4x1024xbf16>, vector<4x1024xbf16>, vector<4x1024xbf16>, vector<4x1024xbf16>, vector<4x1024xbf16>, vector<4x1024xbf16>, vector<4x1024xbf16>, vector<4x1024xbf16> -> vector<36x1024xbf16>
    %c0_22 = arith.constant 0 : index
    %c0_23 = arith.constant 0 : index
    %92 = vector.load %arg3[%c0_22, %c0_23] : memref<8x36xbf16, #tpu.memory_space<vmem>>, vector<8x36xbf16>
    %cst_24 = arith.constant dense<0.000000e+00> : vector<8x1024xf32>
    %93 = tpu.matmul %92, %91, %cst_24 {dimension_numbers = #tpu.dot_dimension_numbers<[1], [0], [0], [1], [0, 0, 1, 1], [], []>} : vector<8x36xbf16>, vector<36x1024xbf16>, vector<8x1024xf32> -> vector<8x1024xf32>
    %c0_25 = arith.constant 0 : index
    %c0_26 = arith.constant 0 : index
    %94 = vector.load %arg4[%c0_25, %c0_26] : memref<8x1xf32, #tpu.memory_space<vmem>>, vector<8x1xf32>
    %95 = vector.broadcast %94 : vector<8x1xf32> to vector<8x1024xf32>
    %96 = arith.addf %93, %95 : vector<8x1024xf32>
    %c0_27 = arith.constant 0 : index
    %c0_28 = arith.constant 0 : index
    %c0_29 = arith.constant 0 : index
    %97 = vector.load %arg5[%c0_27, %c0_28, %c0_29] : memref<1x8x1024xf32, #tpu.memory_space<vmem>>, vector<1x8x1024xf32>
    %98 = vector.shape_cast %97 : vector<1x8x1024xf32> to vector<8x1024xf32>
    %99 = vector.shape_cast %96 : vector<8x1024xf32> to vector<1x8x1024xf32>
    tpu.vector_store %arg5[%c0_27, %c0_28, %c0_29], %99 {strides = array<i32>} : memref<1x8x1024xf32, #tpu.memory_space<vmem>>, vector<1x8x1024xf32>,
    return
  }
  func.func @transform_0(%arg0: i32) -> (i32, i32, i32) {
    %c0_i32 = arith.constant 0 : i32
    %c0_i32_0 = arith.constant 0 : i32
    %c0_i32_1 = arith.constant 0 : i32
    return %arg0, %c0_i32, %c0_i32_0 : i32, i32, i32
  }
  func.func @transform_1(%arg0: i32) -> (i32, i32) {
    %c0_i32 = arith.constant 0 : i32
    %c0_i32_0 = arith.constant 0 : i32
    %c0_i32_1 = arith.constant 0 : i32
    return %c0_i32, %c0_i32_0 : i32, i32
  }
  func.func @transform_2(%arg0: i32) -> (i32, i32) {
    %c0_i32 = arith.constant 0 : i32
    %c0_i32_0 = arith.constant 0 : i32
    %c0_i32_1 = arith.constant 0 : i32
    return %c0_i32, %c0_i32_0 : i32, i32
  }
  func.func @transform_3(%arg0: i32) -> (i32, i32) {
    %c0_i32 = arith.constant 0 : i32
    %c0_i32_0 = arith.constant 0 : i32
    %c0_i32_1 = arith.constant 0 : i32
    return %c0_i32, %c0_i32_0 : i32, i32
  }
  func.func @transform_4(%arg0: i32) -> (i32, i32, i32) {
    %c0_i32 = arith.constant 0 : i32
    %c0_i32_0 = arith.constant 0 : i32
    %c0_i32_1 = arith.constant 0 : i32
    return %arg0, %c0_i32, %c0_i32_0 : i32, i32, i32
  }
}

</mosaic_0001>

<llo_original>
// kernel: tpu_custom_call.1
$region0: #{tpu_custom_call.1}
  #allocation0 [shape = 'u32[]', space=smem, size = 0x4, offset = 0x4, fixed_abs, tag = 'smem constant byte address 0x4 - core index']
  #allocation1 [shape = 'u32[144,128]{1,0:T(1,128)}', space=vmem, size = 0x12000, scoped, tag = 'internal scratch']
  %s0 = inlined_call_operand.vmem [shape: bf16[2,4,256], index: 0, kind: input, shape index: {}]
  %s1 = inlined_call_operand.vmem [shape: bf16[256,1090], index: 1, kind: input, shape index: {}]
  %s2 = inlined_call_operand.vmem [shape: bf16[8,36], index: 2, kind: input, shape index: {}]
  %s3 = inlined_call_operand.vmem [shape: f32[8,1], index: 3, kind: input, shape index: {}]
  %s4 = inlined_call_operand.hbm [shape: f32[2,8,1024], index: 4, kind: output, shape index: {}]
  %s5 = sld [smem:[#allocation0]]
  $region49: #{tpu_custom_call.1} parent=0
    _
  %s7 = ssub.s32 1, %s5
  %s8 = scalar_select 0, %s7, %s5
  $region1: #{tpu_custom_call.1} parent=0
    #allocation2 [shape = 'u8[65536]{0}', space=vmem, size = 0x10000, scoped, tag = 'output window, operand 0']
    #allocation3 [shape = 's32[2]{0}', space=sflag, size = 0x8, scoped, tag = 'scoped memory for tpu_custom_call.1']
    %9 = vsyncpa [#allocation3], 0
    %s10 = scalar_lea.sflag [#allocation3], 1
    %11 = vsyncpa %s10, 0
    loop: start=0, step=1, limit=4
    $region2: #{tpu_custom_call.1} parent=1 // loop_pre_header
      _
    $region3: #{tpu_custom_call.1} parent=1 // loop_header
      %s13 = sphi 0, %s17
      %p14 = scmp.ge.s32.totalorder %s13, 4
      %s23 = sphi 0, %s25
      %s26 = sphi 0, %s23
      %s27 = sphi 0, %s26
      %s43 = sphi 0, %s27
      %s47 = sphi 0, %s47
      %s49 = sphi 0, %s47
      %s50 = sphi 0, %s49
      %s64 = sphi 0, %s50
      %s68 = sphi 0, %s68
      %s70 = sphi 0, %s68
      %s71 = sphi 0, %s70
      %s85 = sphi 0, %s71
      %s89 = sphi 0, %s89
      %s91 = sphi 0, %s89
      %s92 = sphi 0, %s91
      %s106 = sphi 0, %s92
      %s112 = sphi 0, %s114
      %s115 = sphi 0, %s112
      %s116 = sphi 0, %s115
      %s132 = sphi 0, %s116
    $region4: #{tpu_custom_call.1} parent=1 // loop_header_branch
      %16 = sbr.rel (%p14) target = $region8
    $region5: #{tpu_custom_call.1} parent=1 // loop_body
      %s18 = ssub.s32 %s13, 1
      %s19 = ssub.s32 %s13, 2
      %s20 = sadd.s32 %s13, 1
      %s21 = ssub.s32 %s13, %s20
      %p22 = scmp.eq.s32.totalorder %s21, 0
      %s24 = sadd.s32 %s23, 1
      %s25 = scalar_select %p22, %s23, %s24
      %p28 = pneg %p22
      %p29 = scmp.eq.s32.totalorder %s13, 1
      %p30 = por %p28, %p29
      %p31 = scmp.ne.s32.totalorder %s23, %s26
      %p32 = scmp.eq.s32.totalorder %s13, 0
      %p33 = por %p31, %p32
      %p34 = scmp.ne.s32.totalorder %s23, %s26
      %p35 = scmp.eq.s32.totalorder %s18, 1
      %p36 = por %p34, %p35
      %p37 = scmp.ne.s32.totalorder %s26, %s27
      %p38 = scmp.eq.s32.totalorder %s18, 0
      %p39 = por %p37, %p38
      %p40 = scmp.ne.s32.totalorder %s26, %s27
      %p41 = scmp.eq.s32.totalorder %s19, 1
      %p42 = por %p40, %p41
      %p44 = scmp.ne.s32.totalorder %s27, %s43
      %p45 = scmp.eq.s32.totalorder %s19, 0
      %p46 = por %p44, %p45
      %s48 = sadd.s32 %s47, 1
      %p51 = scmp.eq.s32.totalorder %s13, 1
      %p52 = scmp.ne.s32.totalorder %s47, %s49
      %p53 = scmp.eq.s32.totalorder %s13, 0
      %p54 = por %p52, %p53
      %p55 = scmp.ne.s32.totalorder %s47, %s49
      %p56 = scmp.eq.s32.totalorder %s18, 1
      %p57 = por %p55, %p56
      %p58 = scmp.ne.s32.totalorder %s49, %s50
      %p59 = scmp.eq.s32.totalorder %s18, 0
      %p60 = por %p58, %p59
      %p61 = scmp.ne.s32.totalorder %s49, %s50
      %p62 = scmp.eq.s32.totalorder %s19, 1
      %p63 = por %p61, %p62
      %p65 = scmp.ne.s32.totalorder %s50, %s64
      %p66 = scmp.eq.s32.totalorder %s19, 0
      %p67 = por %p65, %p66
      %s69 = sadd.s32 %s68, 1
      %p72 = scmp.eq.s32.totalorder %s13, 1
      %p73 = scmp.ne.s32.totalorder %s68, %s70
      %p74 = scmp.eq.s32.totalorder %s13, 0
      %p75 = por %p73, %p74
      %p76 = scmp.ne.s32.totalorder %s68, %s70
      %p77 = scmp.eq.s32.totalorder %s18, 1
      %p78 = por %p76, %p77
      %p79 = scmp.ne.s32.totalorder %s70, %s71
      %p80 = scmp.eq.s32.totalorder %s18, 0
      %p81 = por %p79, %p80
      %p82 = scmp.ne.s32.totalorder %s70, %s71
      %p83 = scmp.eq.s32.totalorder %s19, 1
      %p84 = por %p82, %p83
      %p86 = scmp.ne.s32.totalorder %s71, %s85
      %p87 = scmp.eq.s32.totalorder %s19, 0
      %p88 = por %p86, %p87
      %s90 = sadd.s32 %s89, 1
      %p93 = scmp.eq.s32.totalorder %s13, 1
      %p94 = scmp.ne.s32.totalorder %s89, %s91
      %p95 = scmp.eq.s32.totalorder %s13, 0
      %p96 = por %p94, %p95
      %p97 = scmp.ne.s32.totalorder %s89, %s91
      %p98 = scmp.eq.s32.totalorder %s18, 1
      %p99 = por %p97, %p98
      %p100 = scmp.ne.s32.totalorder %s91, %s92
      %p101 = scmp.eq.s32.totalorder %s18, 0
      %p102 = por %p100, %p101
      %p103 = scmp.ne.s32.totalorder %s91, %s92
      %p104 = scmp.eq.s32.totalorder %s19, 1
      %p105 = por %p103, %p104
      %p107 = scmp.ne.s32.totalorder %s92, %s106
      %p108 = scmp.eq.s32.totalorder %s19, 0
      %p109 = por %p107, %p108
      %s110 = ssub.s32 %s13, %s20
      %p111 = scmp.eq.s32.totalorder %s110, 0
      %s113 = sadd.s32 %s112, 1
      %s114 = scalar_select %p111, %s112, %s113
      %p117 = pneg %p111
      %p118 = scmp.eq.s32.totalorder %s13, 1
      %p119 = por %p117, %p118
      %p120 = scmp.ne.s32.totalorder %s112, %s115
      %p121 = scmp.eq.s32.totalorder %s13, 0
      %p122 = por %p120, %p121
      %p123 = scmp.ne.s32.totalorder %s112, %s115
      %p124 = scmp.eq.s32.totalorder %s18, 1
      %p125 = por %p123, %p124
      %p126 = scmp.ne.s32.totalorder %s115, %s116
      %p127 = scmp.eq.s32.totalorder %s18, 0
      %p128 = por %p126, %p127
      %p129 = scmp.ne.s32.totalorder %s115, %s116
      %p130 = scmp.eq.s32.totalorder %s19, 1
      %p131 = por %p129, %p130
      %p133 = scmp.ne.s32.totalorder %s116, %s132
      %p134 = scmp.eq.s32.totalorder %s19, 0
      %p135 = por %p133, %p134
      %p136 = scmp.le.s32.totalorder 1, %s13
      %p137 = scmp.lt.s32.totalorder %s13, 3
      %p138 = pnand %p136, %p137
      %p139 = pneg %p138
      // Predicated region
      $region9: #{tpu_custom_call.1} parent=5 // pred_check
        _
      $region10: #{tpu_custom_call.1} parent=5 // pred_check_branch
        %141 = sbr.rel (%p138) target = $region12
      $region11: #{tpu_custom_call.1} parent=5 // pred_region
        %s142 = ssub.s32 %s13, 1
        // Predicated region
        $region13: #{tpu_custom_call.1} parent=11 // pred_check
          %p143 = pneg %p60
        $region14: #{tpu_custom_call.1} parent=11 // pred_check_branch
          %145 = sbr.rel (%p143) target = $region16
        $region15: #{tpu_custom_call.1} parent=11 // pred_region
          _
        $region16: #{tpu_custom_call.1} parent=11 // pred_fallthru
          _
        // Predicated region
        $region17: #{tpu_custom_call.1} parent=11 // pred_check
          %p146 = pneg %p81
        $region18: #{tpu_custom_call.1} parent=11 // pred_check_branch
          %148 = sbr.rel (%p146) target = $region20
        $region19: #{tpu_custom_call.1} parent=11 // pred_region
          _
        $region20: #{tpu_custom_call.1} parent=11 // pred_fallthru
          _
        // Predicated region
        $region21: #{tpu_custom_call.1} parent=11 // pred_check
          %p149 = pneg %p102
        $region22: #{tpu_custom_call.1} parent=11 // pred_check_branch
          %151 = sbr.rel (%p149) target = $region24
        $region23: #{tpu_custom_call.1} parent=11 // pred_region
          _
        $region24: #{tpu_custom_call.1} parent=11 // pred_fallthru
          _
      $region12: #{tpu_custom_call.1} parent=5 // pred_fallthru
        _
      %p152 = scmp.lt.s32.totalorder %s13, 2
      // Predicated region
      $region25: #{tpu_custom_call.1} parent=5 // pred_check
        %p153 = pneg %p152
      $region26: #{tpu_custom_call.1} parent=5 // pred_check_branch
        %155 = sbr.rel (%p153) target = $region28
      $region27: #{tpu_custom_call.1} parent=5 // pred_region
        // Predicated region
        $region29: #{tpu_custom_call.1} parent=27 // pred_check
          %p156 = pneg %p33
        $region30: #{tpu_custom_call.1} parent=27 // pred_check_branch
          %158 = sbr.rel (%p156) target = $region32
        $region31: #{tpu_custom_call.1} parent=27 // pred_region
          %p159 = scmp.lt.s32.totalorder %s13, 1
          %s160 = scalar_select %p159, %s13, 1
          %s161 = smul.addr %s160, 2
          %s162 = smul.addr %s161, 2
          %s163 = scalar_lea.vmem %s0, %s162
        $region32: #{tpu_custom_call.1} parent=27 // pred_fallthru
          _
      $region28: #{tpu_custom_call.1} parent=5 // pred_fallthru
        _
      %p164 = scmp.le.s32.totalorder 1, %s13
      %p165 = scmp.lt.s32.totalorder %s13, 3
      %p166 = pnand %p164, %p165
      %p167 = pneg %p166
      // Predicated region
      $region33: #{tpu_custom_call.1} parent=5 // pred_check
        _
      $region34: #{tpu_custom_call.1} parent=5 // pred_check_branch
        %169 = sbr.rel (%p166) target = $region36
      $region35: #{tpu_custom_call.1} parent=5 // pred_region
        %s170 = ssub.s32 %s13, 1
        %p171 = scmp.lt.s32.totalorder %s18, 1
        %s172 = scalar_select %p171, %s18, 1
        %s173 = smul.addr %s172, 2
        %s174 = smul.addr %s173, 2
        %s175 = scalar_lea.vmem %s0, %s174
        %p176 = pneg %p39
        %p177 = pneg %p36
        %p178 = pneg %p60
        %p179 = pneg %p57
        %p180 = pneg %p81
        %p181 = pneg %p78
        %p182 = pneg %p102
        %p183 = pneg %p99
        %p184 = pneg %p128
        %p185 = pneg %p125
        %s186 = sand.u32 %s115, 1
        %s187 = scalar_lea.sflag [#allocation3], %s186
        %s188 = sand.u32 %s115, 1
        %s189 = smul.addr %s188, 64
        %s190 = scalar_lea.vmem [#allocation2], %s189
        %p191 = scmp.lt.s32.totalorder %s18, 1
        %s192 = scalar_select %p191, %s18, 1
        %s193 = smul.addr %s192, 2
        %s194 = smul.addr %s193, 2
        %s195 = scalar_lea.vmem %s0, %s194
        %v199 = vld [vmem:[%s195] sm:$0xf]
        %v200 = vld [vmem:[%s1] sm:$0xff]
        %v201 = vld [vmem:[%s1 + $0x8] sm:$0xff]
        %v202 = vld [vmem:[%s1 + $0x10] sm:$0xff]
        %v203 = vld [vmem:[%s1 + $0x18] sm:$0xff]
        %v204 = vld [vmem:[%s1 + $0x20] sm:$0xf]
        %v205 = vld [vmem:[%s1 + $0x24] sm:$0xff]
        %v206 = vld [vmem:[%s1 + $0x2c] sm:$0xff]
        %v207 = vld [vmem:[%s1 + $0x34] sm:$0xff]
        %v208 = vld [vmem:[%s1 + $0x3c] sm:$0xff]
        %v209 = vld [vmem:[%s1 + $0x44] sm:$0xf]
        %v210 = vld [vmem:[%s1 + $0x48] sm:$0xff]
        %v211 = vld [vmem:[%s1 + $0x50] sm:$0xff]
        %v212 = vld [vmem:[%s1 + $0x58] sm:$0xff]
        %v213 = vld [vmem:[%s1 + $0x60] sm:$0xff]
        %v214 = vld [vmem:[%s1 + $0x68] sm:$0xf]
        %v215 = vld [vmem:[%s1 + $0x6c] sm:$0xff]
        %v216 = vld [vmem:[%s1 + $0x74] sm:$0xff]
        %v217 = vld [vmem:[%s1 + $0x7c] sm:$0xff]
        %v218 = vld [vmem:[%s1 + $0x84] sm:$0xff]
        %v219 = vld [vmem:[%s1 + $0x8c] sm:$0xf]
        %v220 = vld [vmem:[%s1 + $0x90] sm:$0xff]
        %v221 = vld [vmem:[%s1 + $0x98] sm:$0xff]
        %v222 = vld [vmem:[%s1 + $0xa0] sm:$0xff]
        %v223 = vld [vmem:[%s1 + $0xa8] sm:$0xff]
        %v224 = vld [vmem:[%s1 + $0xb0] sm:$0xf]
        %v225 = vld [vmem:[%s1 + $0xb4] sm:$0xff]
        %v226 = vld [vmem:[%s1 + $0xbc] sm:$0xff]
        %v227 = vld [vmem:[%s1 + $0xc4] sm:$0xff]
        %v228 = vld [vmem:[%s1 + $0xcc] sm:$0xff]
        %v229 = vld [vmem:[%s1 + $0xd4] sm:$0xf]
        %v230 = vld [vmem:[%s1 + $0xd8] sm:$0xff]
        %v231 = vld [vmem:[%s1 + $0xe0] sm:$0xff]
        %v232 = vld [vmem:[%s1 + $0xe8] sm:$0xff]
        %v233 = vld [vmem:[%s1 + $0xf0] sm:$0xff]
        %v234 = vld [vmem:[%s1 + $0xf8] sm:$0xf]
        %v235 = vld [vmem:[%s1 + $0xfc] sm:$0xff]
        %v236 = vld [vmem:[%s1 + $0x104] sm:$0xff]
        %v237 = vld [vmem:[%s1 + $0x10c] sm:$0xff]
        %v238 = vld [vmem:[%s1 + $0x114] sm:$0xff]
        %v239 = vld [vmem:[%s1 + $0x11c] sm:$0xf]
        %v240 = vld [vmem:[%s1 + $0x120] sm:$0xff]
        %v241 = vld [vmem:[%s1 + $0x128] sm:$0xff]
        %v242 = vld [vmem:[%s1 + $0x130] sm:$0xff]
        %v243 = vld [vmem:[%s1 + $0x138] sm:$0xff]
        %v244 = vld [vmem:[%s1 + $0x140] sm:$0xf]
        %v245 = vld [vmem:[%s1 + $0x144] sm:$0xff]
        %v246 = vld [vmem:[%s1 + $0x14c] sm:$0xff]
        %v247 = vld [vmem:[%s1 + $0x154] sm:$0xff]
        %v248 = vld [vmem:[%s1 + $0x15c] sm:$0xff]
        %v249 = vld [vmem:[%s1 + $0x164] sm:$0xf]
        %v250 = vld [vmem:[%s1 + $0x168] sm:$0xff]
        %v251 = vld [vmem:[%s1 + $0x170] sm:$0xff]
        %v252 = vld [vmem:[%s1 + $0x178] sm:$0xff]
        %v253 = vld [vmem:[%s1 + $0x180] sm:$0xff]
        %v254 = vld [vmem:[%s1 + $0x188] sm:$0xf]
        %v255 = vld [vmem:[%s1 + $0x18c] sm:$0xff]
        %v256 = vld [vmem:[%s1 + $0x194] sm:$0xff]
        %v257 = vld [vmem:[%s1 + $0x19c] sm:$0xff]
        %v258 = vld [vmem:[%s1 + $0x1a4] sm:$0xff]
        %v259 = vld [vmem:[%s1 + $0x1ac] sm:$0xf]
        %v260 = vld [vmem:[%s1 + $0x1b0] sm:$0xff]
        %v261 = vld [vmem:[%s1 + $0x1b8] sm:$0xff]
        %v262 = vld [vmem:[%s1 + $0x1c0] sm:$0xff]
        %v263 = vld [vmem:[%s1 + $0x1c8] sm:$0xff]
        %v264 = vld [vmem:[%s1 + $0x1d0] sm:$0xf]
        %v265 = vld [vmem:[%s1 + $0x1d4] sm:$0xff]
        %v266 = vld [vmem:[%s1 + $0x1dc] sm:$0xff]
        %v267 = vld [vmem:[%s1 + $0x1e4] sm:$0xff]
        %v268 = vld [vmem:[%s1 + $0x1ec] sm:$0xff]
        %v269 = vld [vmem:[%s1 + $0x1f4] sm:$0xf]
        %v270 = vld [vmem:[%s1 + $0x1f8] sm:$0xff]
        %v271 = vld [vmem:[%s1 + $0x200] sm:$0xff]
        %v272 = vld [vmem:[%s1 + $0x208] sm:$0xff]
        %v273 = vld [vmem:[%s1 + $0x210] sm:$0xff]
        %v274 = vld [vmem:[%s1 + $0x218] sm:$0xf]
        %v275 = vld [vmem:[%s1 + $0x21c] sm:$0xff]
        %v276 = vld [vmem:[%s1 + $0x224] sm:$0xff]
        %v277 = vld [vmem:[%s1 + $0x22c] sm:$0xff]
        %v278 = vld [vmem:[%s1 + $0x234] sm:$0xff]
        %v279 = vld [vmem:[%s1 + $0x23c] sm:$0xf]
        %v280 = vld [vmem:[%s1 + $0x240] sm:$0xff]
        %v281 = vld [vmem:[%s1 + $0x248] sm:$0xff]
        %v282 = vld [vmem:[%s1 + $0x250] sm:$0xff]
        %v283 = vld [vmem:[%s1 + $0x258] sm:$0xff]
        %v284 = vld [vmem:[%s1 + $0x260] sm:$0xf]
        %v285 = vld [vmem:[%s1 + $0x264] sm:$0xff]
        %v286 = vld [vmem:[%s1 + $0x26c] sm:$0xff]
        %v287 = vld [vmem:[%s1 + $0x274] sm:$0xff]
        %v288 = vld [vmem:[%s1 + $0x27c] sm:$0xff]
        %v289 = vld [vmem:[%s1 + $0x284] sm:$0xf]
        %v290 = vld [vmem:[%s1 + $0x288] sm:$0xff]
        %v291 = vld [vmem:[%s1 + $0x290] sm:$0xff]
        %v292 = vld [vmem:[%s1 + $0x298] sm:$0xff]
        %v293 = vld [vmem:[%s1 + $0x2a0] sm:$0xff]
        %v294 = vld [vmem:[%s1 + $0x2a8] sm:$0xf]
        %v295 = vld [vmem:[%s1 + $0x2ac] sm:$0xff]
        %v296 = vld [vmem:[%s1 + $0x2b4] sm:$0xff]
        %v297 = vld [vmem:[%s1 + $0x2bc] sm:$0xff]
        %v298 = vld [vmem:[%s1 + $0x2c4] sm:$0xff]
        %v299 = vld [vmem:[%s1 + $0x2cc] sm:$0xf]
        %v300 = vld [vmem:[%s1 + $0x2d0] sm:$0xff]
        %v301 = vld [vmem:[%s1 + $0x2d8] sm:$0xff]
        %v302 = vld [vmem:[%s1 + $0x2e0] sm:$0xff]
        %v303 = vld [vmem:[%s1 + $0x2e8] sm:$0xff]
        %v304 = vld [vmem:[%s1 + $0x2f0] sm:$0xf]
        %v305 = vld [vmem:[%s1 + $0x2f4] sm:$0xff]
        %v306 = vld [vmem:[%s1 + $0x2fc] sm:$0xff]
        %v307 = vld [vmem:[%s1 + $0x304] sm:$0xff]
        %v308 = vld [vmem:[%s1 + $0x30c] sm:$0xff]
        %v309 = vld [vmem:[%s1 + $0x314] sm:$0xf]
        %v310 = vld [vmem:[%s1 + $0x318] sm:$0xff]
        %v311 = vld [vmem:[%s1 + $0x320] sm:$0xff]
        %v312 = vld [vmem:[%s1 + $0x328] sm:$0xff]
        %v313 = vld [vmem:[%s1 + $0x330] sm:$0xff]
        %v314 = vld [vmem:[%s1 + $0x338] sm:$0xf]
        %v315 = vld [vmem:[%s1 + $0x33c] sm:$0xff]
        %v316 = vld [vmem:[%s1 + $0x344] sm:$0xff]
        %v317 = vld [vmem:[%s1 + $0x34c] sm:$0xff]
        %v318 = vld [vmem:[%s1 + $0x354] sm:$0xff]
        %v319 = vld [vmem:[%s1 + $0x35c] sm:$0xf]
        %v320 = vld [vmem:[%s1 + $0x360] sm:$0xff]
        %v321 = vld [vmem:[%s1 + $0x368] sm:$0xff]
        %v322 = vld [vmem:[%s1 + $0x370] sm:$0xff]
        %v323 = vld [vmem:[%s1 + $0x378] sm:$0xff]
        %v324 = vld [vmem:[%s1 + $0x380] sm:$0xf]
        %v325 = vld [vmem:[%s1 + $0x384] sm:$0xff]
        %v326 = vld [vmem:[%s1 + $0x38c] sm:$0xff]
        %v327 = vld [vmem:[%s1 + $0x394] sm:$0xff]
        %v328 = vld [vmem:[%s1 + $0x39c] sm:$0xff]
        %v329 = vld [vmem:[%s1 + $0x3a4] sm:$0xf]
        %v330 = vld [vmem:[%s1 + $0x3a8] sm:$0xff]
        %v331 = vld [vmem:[%s1 + $0x3b0] sm:$0xff]
        %v332 = vld [vmem:[%s1 + $0x3b8] sm:$0xff]
        %v333 = vld [vmem:[%s1 + $0x3c0] sm:$0xff]
        %v334 = vld [vmem:[%s1 + $0x3c8] sm:$0xf]
        %v335 = vld [vmem:[%s1 + $0x3cc] sm:$0xff]
        %v336 = vld [vmem:[%s1 + $0x3d4] sm:$0xff]
        %v337 = vld [vmem:[%s1 + $0x3dc] sm:$0xff]
        %v338 = vld [vmem:[%s1 + $0x3e4] sm:$0xff]
        %v339 = vld [vmem:[%s1 + $0x3ec] sm:$0xf]
        %v340 = vld [vmem:[%s1 + $0x3f0] sm:$0xff]
        %v341 = vld [vmem:[%s1 + $0x3f8] sm:$0xff]
        %v342 = vld [vmem:[%s1 + $0x400] sm:$0xff]
        %v343 = vld [vmem:[%s1 + $0x408] sm:$0xff]
        %v344 = vld [vmem:[%s1 + $0x410] sm:$0xf]
        %v345 = vld [vmem:[%s1 + $0x414] sm:$0xff]
        %v346 = vld [vmem:[%s1 + $0x41c] sm:$0xff]
        %v347 = vld [vmem:[%s1 + $0x424] sm:$0xff]
        %v348 = vld [vmem:[%s1 + $0x42c] sm:$0xff]
        %v349 = vld [vmem:[%s1 + $0x434] sm:$0xf]
        %v350 = vld [vmem:[%s1 + $0x438] sm:$0xff]
        %v351 = vld [vmem:[%s1 + $0x440] sm:$0xff]
        %v352 = vld [vmem:[%s1 + $0x448] sm:$0xff]
        %v353 = vld [vmem:[%s1 + $0x450] sm:$0xff]
        %v354 = vld [vmem:[%s1 + $0x458] sm:$0xf]
        %v355 = vld [vmem:[%s1 + $0x45c] sm:$0xff]
        %v356 = vld [vmem:[%s1 + $0x464] sm:$0xff]
        %v357 = vld [vmem:[%s1 + $0x46c] sm:$0xff]
        %v358 = vld [vmem:[%s1 + $0x474] sm:$0xff]
        %v359 = vld [vmem:[%s1 + $0x47c] sm:$0xf]
        %v362 = vunpack.c.l.s4 1983009808
        %v363 = vunpack.c.0.s8 %v362
        %v364 = vlaneseq
        %v365 = vshrl.u32 %v364, 7
        %v366 = vsub.s32 %v363, %v365
        %v367 = vrot.slane %v199, %v366
        %v368 = vcombine.high %v367, %v367
        %v531 = vunpack.c.l.b16 %v200
        %v532 = vunpack.c.h.b16 %v200
        %v533 = vunpack.c.l.b16 %v201
        %v534 = vunpack.c.h.b16 %v201
        %v535 = vunpack.c.l.b16 %v202
        %v536 = vunpack.c.h.b16 %v202
        %v537 = vunpack.c.l.b16 %v203
        %v538 = vunpack.c.h.b16 %v203
        %v539 = vunpack.c.l.b16 %v204
        %v540 = vunpack.c.l.b16 %v205
        %v541 = vunpack.c.h.b16 %v205
        %v542 = vunpack.c.l.b16 %v206
        %v543 = vunpack.c.h.b16 %v206
        %v544 = vunpack.c.l.b16 %v207
        %v545 = vunpack.c.h.b16 %v207
        %v546 = vunpack.c.l.b16 %v208
        %v547 = vunpack.c.h.b16 %v208
        %v548 = vunpack.c.l.b16 %v209
        %v549 = vunpack.c.l.b16 %v210
        %v550 = vunpack.c.h.b16 %v210
        %v551 = vunpack.c.l.b16 %v211
        %v552 = vunpack.c.h.b16 %v211
        %v553 = vunpack.c.l.b16 %v212
        %v554 = vunpack.c.h.b16 %v212
        %v555 = vunpack.c.l.b16 %v213
        %v556 = vunpack.c.h.b16 %v213
        %v557 = vunpack.c.l.b16 %v214
        %v558 = vunpack.c.l.b16 %v215
        %v559 = vunpack.c.h.b16 %v215
        %v560 = vunpack.c.l.b16 %v216
        %v561 = vunpack.c.h.b16 %v216
        %v562 = vunpack.c.l.b16 %v217
        %v563 = vunpack.c.h.b16 %v217
        %v564 = vunpack.c.l.b16 %v218
        %v565 = vunpack.c.h.b16 %v218
        %v566 = vunpack.c.l.b16 %v219
        %v567 = vunpack.c.l.b16 %v220
        %v568 = vunpack.c.h.b16 %v220
        %v569 = vunpack.c.l.b16 %v221
        %v570 = vunpack.c.h.b16 %v221
        %v571 = vunpack.c.l.b16 %v222
        %v572 = vunpack.c.h.b16 %v222
        %v573 = vunpack.c.l.b16 %v223
        %v574 = vunpack.c.h.b16 %v223
        %v575 = vunpack.c.l.b16 %v224
        %v576 = vunpack.c.l.b16 %v225
        %v577 = vunpack.c.h.b16 %v225
        %v578 = vunpack.c.l.b16 %v226
        %v579 = vunpack.c.h.b16 %v226
        %v580 = vunpack.c.l.b16 %v227
        %v581 = vunpack.c.h.b16 %v227
        %v582 = vunpack.c.l.b16 %v228
        %v583 = vunpack.c.h.b16 %v228
        %v584 = vunpack.c.l.b16 %v229
        %v585 = vunpack.c.l.b16 %v230
        %v586 = vunpack.c.h.b16 %v230
        %v587 = vunpack.c.l.b16 %v231
        %v588 = vunpack.c.h.b16 %v231
        %v589 = vunpack.c.l.b16 %v232
        %v590 = vunpack.c.h.b16 %v232
        %v591 = vunpack.c.l.b16 %v233
        %v592 = vunpack.c.h.b16 %v233
        %v593 = vunpack.c.l.b16 %v234
        %v594 = vunpack.c.l.b16 %v235
        %v595 = vunpack.c.h.b16 %v235
        %v596 = vunpack.c.l.b16 %v236
        %v597 = vunpack.c.h.b16 %v236
        %v598 = vunpack.c.l.b16 %v237
        %v599 = vunpack.c.h.b16 %v237
        %v600 = vunpack.c.l.b16 %v238
        %v601 = vunpack.c.h.b16 %v238
        %v602 = vunpack.c.l.b16 %v239
        %v603 = vunpack.c.l.b16 %v240
        %v604 = vunpack.c.h.b16 %v240
        %v605 = vunpack.c.l.b16 %v241
        %v606 = vunpack.c.h.b16 %v241
        %v607 = vunpack.c.l.b16 %v242
        %v608 = vunpack.c.h.b16 %v242
        %v609 = vunpack.c.l.b16 %v243
        %v610 = vunpack.c.h.b16 %v243
        %v611 = vunpack.c.l.b16 %v244
        %v612 = vunpack.c.l.b16 %v245
        %v613 = vunpack.c.h.b16 %v245
        %v614 = vunpack.c.l.b16 %v246
        %v615 = vunpack.c.h.b16 %v246
        %v616 = vunpack.c.l.b16 %v247
        %v617 = vunpack.c.h.b16 %v247
        %v618 = vunpack.c.l.b16 %v248
        %v619 = vunpack.c.h.b16 %v248
        %v620 = vunpack.c.l.b16 %v249
        %v621 = vunpack.c.l.b16 %v250
        %v622 = vunpack.c.h.b16 %v250
        %v623 = vunpack.c.l.b16 %v251
        %v624 = vunpack.c.h.b16 %v251
        %v625 = vunpack.c.l.b16 %v252
        %v626 = vunpack.c.h.b16 %v252
        %v627 = vunpack.c.l.b16 %v253
        %v628 = vunpack.c.h.b16 %v253
        %v629 = vunpack.c.l.b16 %v254
        %v630 = vunpack.c.l.b16 %v255
        %v631 = vunpack.c.h.b16 %v255
        %v632 = vunpack.c.l.b16 %v256
        %v633 = vunpack.c.h.b16 %v256
        %v634 = vunpack.c.l.b16 %v257
        %v635 = vunpack.c.h.b16 %v257
        %v636 = vunpack.c.l.b16 %v258
        %v637 = vunpack.c.h.b16 %v258
        %v638 = vunpack.c.l.b16 %v259
        %v639 = vunpack.c.l.b16 %v260
        %v640 = vunpack.c.h.b16 %v260
        %v641 = vunpack.c.l.b16 %v261
        %v642 = vunpack.c.h.b16 %v261
        %v643 = vunpack.c.l.b16 %v262
        %v644 = vunpack.c.h.b16 %v262
        %v645 = vunpack.c.l.b16 %v263
        %v646 = vunpack.c.h.b16 %v263
        %v647 = vunpack.c.l.b16 %v264
        %v648 = vunpack.c.l.b16 %v265
        %v649 = vunpack.c.h.b16 %v265
        %v650 = vunpack.c.l.b16 %v266
        %v651 = vunpack.c.h.b16 %v266
        %v652 = vunpack.c.l.b16 %v267
        %v653 = vunpack.c.h.b16 %v267
        %v654 = vunpack.c.l.b16 %v268
        %v655 = vunpack.c.h.b16 %v268
        %v656 = vunpack.c.l.b16 %v269
        %v657 = vunpack.c.l.b16 %v270
        %v658 = vunpack.c.h.b16 %v270
        %v659 = vunpack.c.l.b16 %v271
        %v660 = vunpack.c.h.b16 %v271
        %v661 = vunpack.c.l.b16 %v272
        %v662 = vunpack.c.h.b16 %v272
        %v663 = vunpack.c.l.b16 %v273
        %v664 = vunpack.c.h.b16 %v273
        %v665 = vunpack.c.l.b16 %v274
        %v666 = vunpack.c.l.b16 %v275
        %v667 = vunpack.c.h.b16 %v275
        %v668 = vunpack.c.l.b16 %v276
        %v669 = vunpack.c.h.b16 %v276
        %v670 = vunpack.c.l.b16 %v277
        %v671 = vunpack.c.h.b16 %v277
        %v672 = vunpack.c.l.b16 %v278
        %v673 = vunpack.c.h.b16 %v278
        %v674 = vunpack.c.l.b16 %v279
        %v675 = vunpack.c.l.b16 %v280
        %v676 = vunpack.c.h.b16 %v280
        %v677 = vunpack.c.l.b16 %v281
        %v678 = vunpack.c.h.b16 %v281
        %v679 = vunpack.c.l.b16 %v282
        %v680 = vunpack.c.h.b16 %v282
        %v681 = vunpack.c.l.b16 %v283
        %v682 = vunpack.c.h.b16 %v283
        %v683 = vunpack.c.l.b16 %v284
        %v684 = vunpack.c.l.b16 %v285
        %v685 = vunpack.c.h.b16 %v285
        %v686 = vunpack.c.l.b16 %v286
        %v687 = vunpack.c.h.b16 %v286
        %v688 = vunpack.c.l.b16 %v287
        %v689 = vunpack.c.h.b16 %v287
        %v690 = vunpack.c.l.b16 %v288
        %v691 = vunpack.c.h.b16 %v288
        %v692 = vunpack.c.l.b16 %v289
        %v693 = vunpack.c.l.b16 %v290
        %v694 = vunpack.c.h.b16 %v290
        %v695 = vunpack.c.l.b16 %v291
        %v696 = vunpack.c.h.b16 %v291
        %v697 = vunpack.c.l.b16 %v292
        %v698 = vunpack.c.h.b16 %v292
        %v699 = vunpack.c.l.b16 %v293
        %v700 = vunpack.c.h.b16 %v293
        %v701 = vunpack.c.l.b16 %v294
        %v702 = vunpack.c.l.b16 %v295
        %v703 = vunpack.c.h.b16 %v295
        %v704 = vunpack.c.l.b16 %v296
        %v705 = vunpack.c.h.b16 %v296
        %v706 = vunpack.c.l.b16 %v297
        %v707 = vunpack.c.h.b16 %v297
        %v708 = vunpack.c.l.b16 %v298
        %v709 = vunpack.c.h.b16 %v298
        %v710 = vunpack.c.l.b16 %v299
        %v711 = vunpack.c.l.b16 %v300
        %v712 = vunpack.c.h.b16 %v300
        %v713 = vunpack.c.l.b16 %v301
        %v714 = vunpack.c.h.b16 %v301
        %v715 = vunpack.c.l.b16 %v302
        %v716 = vunpack.c.h.b16 %v302
        %v717 = vunpack.c.l.b16 %v303
        %v718 = vunpack.c.h.b16 %v303
        %v719 = vunpack.c.l.b16 %v304
        %v720 = vunpack.c.l.b16 %v305
        %v721 = vunpack.c.h.b16 %v305
        %v722 = vunpack.c.l.b16 %v306
        %v723 = vunpack.c.h.b16 %v306
        %v724 = vunpack.c.l.b16 %v307
        %v725 = vunpack.c.h.b16 %v307
        %v726 = vunpack.c.l.b16 %v308
        %v727 = vunpack.c.h.b16 %v308
        %v728 = vunpack.c.l.b16 %v309
        %v729 = vunpack.c.l.b16 %v310
        %v730 = vunpack.c.h.b16 %v310
        %v731 = vunpack.c.l.b16 %v311
        %v732 = vunpack.c.h.b16 %v311
        %v733 = vunpack.c.l.b16 %v312
        %v734 = vunpack.c.h.b16 %v312
        %v735 = vunpack.c.l.b16 %v313
        %v736 = vunpack.c.h.b16 %v313
        %v737 = vunpack.c.l.b16 %v314
        %v738 = vunpack.c.l.b16 %v315
        %v739 = vunpack.c.h.b16 %v315
        %v740 = vunpack.c.l.b16 %v316
        %v741 = vunpack.c.h.b16 %v316
        %v742 = vunpack.c.l.b16 %v317
        %v743 = vunpack.c.h.b16 %v317
        %v744 = vunpack.c.l.b16 %v318
        %v745 = vunpack.c.h.b16 %v318
        %v746 = vunpack.c.l.b16 %v319
        %v747 = vunpack.c.l.b16 %v320
        %v748 = vunpack.c.h.b16 %v320
        %v749 = vunpack.c.l.b16 %v321
        %v750 = vunpack.c.h.b16 %v321
        %v751 = vunpack.c.l.b16 %v322
        %v752 = vunpack.c.h.b16 %v322
        %v753 = vunpack.c.l.b16 %v323
        %v754 = vunpack.c.h.b16 %v323
        %v755 = vunpack.c.l.b16 %v324
        %v756 = vunpack.c.l.b16 %v325
        %v757 = vunpack.c.h.b16 %v325
        %v758 = vunpack.c.l.b16 %v326
        %v759 = vunpack.c.h.b16 %v326
        %v760 = vunpack.c.l.b16 %v327
        %v761 = vunpack.c.h.b16 %v327
        %v762 = vunpack.c.l.b16 %v328
        %v763 = vunpack.c.h.b16 %v328
        %v764 = vunpack.c.l.b16 %v329
        %v765 = vunpack.c.l.b16 %v330
        %v766 = vunpack.c.h.b16 %v330
        %v767 = vunpack.c.l.b16 %v331
        %v768 = vunpack.c.h.b16 %v331
        %v769 = vunpack.c.l.b16 %v332
        %v770 = vunpack.c.h.b16 %v332
        %v771 = vunpack.c.l.b16 %v333
        %v772 = vunpack.c.h.b16 %v333
        %v773 = vunpack.c.l.b16 %v334
        %v774 = vunpack.c.l.b16 %v335
        %v775 = vunpack.c.h.b16 %v335
        %v776 = vunpack.c.l.b16 %v336
        %v777 = vunpack.c.h.b16 %v336
        %v778 = vunpack.c.l.b16 %v337
        %v779 = vunpack.c.h.b16 %v337
        %v780 = vunpack.c.l.b16 %v338
        %v781 = vunpack.c.h.b16 %v338
        %v782 = vunpack.c.l.b16 %v339
        %v783 = vunpack.c.l.b16 %v340
        %v784 = vunpack.c.h.b16 %v340
        %v785 = vunpack.c.l.b16 %v341
        %v786 = vunpack.c.h.b16 %v341
        %v787 = vunpack.c.l.b16 %v342
        %v788 = vunpack.c.h.b16 %v342
        %v789 = vunpack.c.l.b16 %v343
        %v790 = vunpack.c.h.b16 %v343
        %v791 = vunpack.c.l.b16 %v344
        %v792 = vunpack.c.l.b16 %v345
        %v793 = vunpack.c.h.b16 %v345
        %v794 = vunpack.c.l.b16 %v346
        %v795 = vunpack.c.h.b16 %v346
        %v796 = vunpack.c.l.b16 %v347
        %v797 = vunpack.c.h.b16 %v347
        %v798 = vunpack.c.l.b16 %v348
        %v799 = vunpack.c.h.b16 %v348
        %v800 = vunpack.c.l.b16 %v349
        %v801 = vunpack.c.l.b16 %v350
        %v802 = vunpack.c.h.b16 %v350
        %v803 = vunpack.c.l.b16 %v351
        %v804 = vunpack.c.h.b16 %v351
        %v805 = vunpack.c.l.b16 %v352
        %v806 = vunpack.c.h.b16 %v352
        %v807 = vunpack.c.l.b16 %v353
        %v808 = vunpack.c.h.b16 %v353
        %v809 = vunpack.c.l.b16 %v354
        %v810 = vunpack.c.l.b16 %v355
        %v811 = vunpack.c.h.b16 %v355
        %v812 = vunpack.c.l.b16 %v356
        %v813 = vunpack.c.h.b16 %v356
        %v814 = vunpack.c.l.b16 %v357
        %v815 = vunpack.c.h.b16 %v357
        %v816 = vunpack.c.l.b16 %v358
        %v817 = vunpack.c.h.b16 %v358
        %v818 = vunpack.c.l.b16 %v359
        %v819 = vpack.c.b16 %v540, %v531
        %v820 = vpack.c.b16 %v541, %v532
        %v821 = vpack.c.b16 %v542, %v533
        %v822 = vpack.c.b16 %v543, %v534
        %v823 = vpack.c.b16 %v544, %v535
        %v824 = vpack.c.b16 %v545, %v536
        %v825 = vpack.c.b16 %v546, %v537
        %v826 = vpack.c.b16 %v547, %v538
        %v827 = vpack.c.b16 %v548, %v539
        %v828 = vpack.c.b16 %v558, %v549
        %v829 = vpack.c.b16 %v559, %v550
        %v830 = vpack.c.b16 %v560, %v551
        %v831 = vpack.c.b16 %v561, %v552
        %v832 = vpack.c.b16 %v562, %v553
        %v833 = vpack.c.b16 %v563, %v554
        %v834 = vpack.c.b16 %v564, %v555
        %v835 = vpack.c.b16 %v565, %v556
        %v836 = vpack.c.b16 %v566, %v557
        %v837 = vpack.c.b16 %v576, %v567
        %v838 = vpack.c.b16 %v577, %v568
        %v839 = vpack.c.b16 %v578, %v569
        %v840 = vpack.c.b16 %v579, %v570
        %v841 = vpack.c.b16 %v580, %v571
        %v842 = vpack.c.b16 %v581, %v572
        %v843 = vpack.c.b16 %v582, %v573
        %v844 = vpack.c.b16 %v583, %v574
        %v845 = vpack.c.b16 %v584, %v575
        %v846 = vpack.c.b16 %v594, %v585
        %v847 = vpack.c.b16 %v595, %v586
        %v848 = vpack.c.b16 %v596, %v587
        %v849 = vpack.c.b16 %v597, %v588
        %v850 = vpack.c.b16 %v598, %v589
        %v851 = vpack.c.b16 %v599, %v590
        %v852 = vpack.c.b16 %v600, %v591
        %v853 = vpack.c.b16 %v601, %v592
        %v854 = vpack.c.b16 %v602, %v593
        %v855 = vpack.c.b16 %v612, %v603
        %v856 = vpack.c.b16 %v613, %v604
        %v857 = vpack.c.b16 %v614, %v605
        %v858 = vpack.c.b16 %v615, %v606
        %v859 = vpack.c.b16 %v616, %v607
        %v860 = vpack.c.b16 %v617, %v608
        %v861 = vpack.c.b16 %v618, %v609
        %v862 = vpack.c.b16 %v619, %v610
        %v863 = vpack.c.b16 %v620, %v611
        %v864 = vpack.c.b16 %v630, %v621
        %v865 = vpack.c.b16 %v631, %v622
        %v866 = vpack.c.b16 %v632, %v623
        %v867 = vpack.c.b16 %v633, %v624
        %v868 = vpack.c.b16 %v634, %v625
        %v869 = vpack.c.b16 %v635, %v626
        %v870 = vpack.c.b16 %v636, %v627
        %v871 = vpack.c.b16 %v637, %v628
        %v872 = vpack.c.b16 %v638, %v629
        %v873 = vpack.c.b16 %v648, %v639
        %v874 = vpack.c.b16 %v649, %v640
        %v875 = vpack.c.b16 %v650, %v641
        %v876 = vpack.c.b16 %v651, %v642
        %v877 = vpack.c.b16 %v652, %v643
        %v878 = vpack.c.b16 %v653, %v644
        %v879 = vpack.c.b16 %v654, %v645
        %v880 = vpack.c.b16 %v655, %v646
        %v881 = vpack.c.b16 %v656, %v647
        %v882 = vpack.c.b16 %v666, %v657
        %v883 = vpack.c.b16 %v667, %v658
        %v884 = vpack.c.b16 %v668, %v659
        %v885 = vpack.c.b16 %v669, %v660
        %v886 = vpack.c.b16 %v670, %v661
        %v887 = vpack.c.b16 %v671, %v662
        %v888 = vpack.c.b16 %v672, %v663
        %v889 = vpack.c.b16 %v673, %v664
        %v890 = vpack.c.b16 %v674, %v665
        %v891 = vpack.c.b16 %v684, %v675
        %v892 = vpack.c.b16 %v685, %v676
        %v893 = vpack.c.b16 %v686, %v677
        %v894 = vpack.c.b16 %v687, %v678
        %v895 = vpack.c.b16 %v688, %v679
        %v896 = vpack.c.b16 %v689, %v680
        %v897 = vpack.c.b16 %v690, %v681
        %v898 = vpack.c.b16 %v691, %v682
        %v899 = vpack.c.b16 %v692, %v683
        %v900 = vpack.c.b16 %v702, %v693
        %v901 = vpack.c.b16 %v703, %v694
        %v902 = vpack.c.b16 %v704, %v695
        %v903 = vpack.c.b16 %v705, %v696
        %v904 = vpack.c.b16 %v706, %v697
        %v905 = vpack.c.b16 %v707, %v698
        %v906 = vpack.c.b16 %v708, %v699
        %v907 = vpack.c.b16 %v709, %v700
        %v908 = vpack.c.b16 %v710, %v701
        %v909 = vpack.c.b16 %v720, %v711
        %v910 = vpack.c.b16 %v721, %v712
        %v911 = vpack.c.b16 %v722, %v713
        %v912 = vpack.c.b16 %v723, %v714
        %v913 = vpack.c.b16 %v724, %v715
        %v914 = vpack.c.b16 %v725, %v716
        %v915 = vpack.c.b16 %v726, %v717
        %v916 = vpack.c.b16 %v727, %v718
        %v917 = vpack.c.b16 %v728, %v719
        %v918 = vpack.c.b16 %v738, %v729
        %v919 = vpack.c.b16 %v739, %v730
        %v920 = vpack.c.b16 %v740, %v731
        %v921 = vpack.c.b16 %v741, %v732
        %v922 = vpack.c.b16 %v742, %v733
        %v923 = vpack.c.b16 %v743, %v734
        %v924 = vpack.c.b16 %v744, %v735
        %v925 = vpack.c.b16 %v745, %v736
        %v926 = vpack.c.b16 %v746, %v737
        %v927 = vpack.c.b16 %v756, %v747
        %v928 = vpack.c.b16 %v757, %v748
        %v929 = vpack.c.b16 %v758, %v749
        %v930 = vpack.c.b16 %v759, %v750
        %v931 = vpack.c.b16 %v760, %v751
        %v932 = vpack.c.b16 %v761, %v752
        %v933 = vpack.c.b16 %v762, %v753
        %v934 = vpack.c.b16 %v763, %v754
        %v935 = vpack.c.b16 %v764, %v755
        %v936 = vpack.c.b16 %v774, %v765
        %v937 = vpack.c.b16 %v775, %v766
        %v938 = vpack.c.b16 %v776, %v767
        %v939 = vpack.c.b16 %v777, %v768
        %v940 = vpack.c.b16 %v778, %v769
        %v941 = vpack.c.b16 %v779, %v770
        %v942 = vpack.c.b16 %v780, %v771
        %v943 = vpack.c.b16 %v781, %v772
        %v944 = vpack.c.b16 %v782, %v773
        %v945 = vpack.c.b16 %v792, %v783
        %v946 = vpack.c.b16 %v793, %v784
        %v947 = vpack.c.b16 %v794, %v785
        %v948 = vpack.c.b16 %v795, %v786
        %v949 = vpack.c.b16 %v796, %v787
        %v950 = vpack.c.b16 %v797, %v788
        %v951 = vpack.c.b16 %v798, %v789
        %v952 = vpack.c.b16 %v799, %v790
        %v953 = vpack.c.b16 %v800, %v791
        %v954 = vpack.c.b16 %v810, %v801
        %v955 = vpack.c.b16 %v811, %v802
        %v956 = vpack.c.b16 %v812, %v803
        %v957 = vpack.c.b16 %v813, %v804
        %v958 = vpack.c.b16 %v814, %v805
        %v959 = vpack.c.b16 %v815, %v806
        %v960 = vpack.c.b16 %v816, %v807
        %v961 = vpack.c.b16 %v817, %v808
        %v962 = vpack.c.b16 %v818, %v809
        %1107 = vmatprep.subr.bf16.mxu0 %v820
        %1108 = vmatpush1.bf16.msra.mxu0 %v819
        %1109 = vmatprep.subr.bf16.mxu0 %v829
        %1110 = vmatpush1.bf16.msra.mxu0 %v828
        %1111 = vmatprep.subr.bf16.mxu0 %v838
        %1112 = vmatpush1.bf16.msra.mxu0 %v837
        %1113 = vmatprep.subr.bf16.mxu0 %v847
        %1114 = vmatpush1.bf16.msra.mxu0 %v846
        %1115 = vmatprep.subr.bf16.mxu0 %v856
        %1116 = vmatpush1.bf16.msra.mxu0 %v855
        %1117 = vmatprep.subr.bf16.mxu0 %v865
        %1118 = vmatpush1.bf16.msra.mxu0 %v864
        %1119 = vmatprep.subr.bf16.mxu0 %v874
        %1120 = vmatpush1.bf16.msra.mxu0 %v873
        %1121 = vmatprep.subr.bf16.mxu0 %v883
        %1122 = vmatpush1.bf16.msra.mxu0 %v882
        %1123 = vmatprep.subr.bf16.mxu0 %v892
        %1124 = vmatpush1.bf16.msra.mxu0 %v891
        %1125 = vmatprep.subr.bf16.mxu0 %v901
        %1126 = vmatpush1.bf16.msra.mxu0 %v900
        %1127 = vmatprep.subr.bf16.mxu0 %v910
        %1128 = vmatpush1.bf16.msra.mxu0 %v909
        %1129 = vmatprep.subr.bf16.mxu0 %v919
        %1130 = vmatpush1.bf16.msra.mxu0 %v918
        %1131 = vmatprep.subr.bf16.mxu0 %v928
        %1132 = vmatpush1.bf16.msra.mxu0 %v927
        %1133 = vmatprep.subr.bf16.mxu0 %v937
        %1134 = vmatpush1.bf16.msra.mxu0 %v936
        %1135 = vmatprep.subr.bf16.mxu0 %v946
        %1136 = vmatpush1.bf16.msra.mxu0 %v945
        %1137 = vmatprep.subr.bf16.mxu0 %v955
        %1138 = vmatpush1.bf16.msra.mxu0 %v954
        %1139 = vmatprep.mubr.bf16.mxu0 %v368
        %1140 = vmatmul.mubr.bf16.gmra.mrb[0].mxu0 %v367
        %v1141 = vpop.f32.mrb[0].mxu0
        %v1142 = vadd.f32 0.0, %v1141
        %v1143 = vpop.f32.mrb[0].mxu0
        %v1144 = vadd.f32 0.0, %v1143
        %v1145 = vpop.f32.mrb[0].mxu0
        %v1146 = vpop.f32.mrb[0].mxu0
        %1147 = vdwg.mxu0
        %1148 = vmatprep.subr.bf16.mxu0 %v822
        %1149 = vmatpush1.bf16.msra.mxu0 %v821
        %1150 = vmatprep.subr.bf16.mxu0 %v831
        %1151 = vmatpush1.bf16.msra.mxu0 %v830
        %1152 = vmatprep.subr.bf16.mxu0 %v840
        %1153 = vmatpush1.bf16.msra.mxu0 %v839
        %1154 = vmatprep.subr.bf16.mxu0 %v849
        %1155 = vmatpush1.bf16.msra.mxu0 %v848
        %1156 = vmatprep.subr.bf16.mxu0 %v858
        %1157 = vmatpush1.bf16.msra.mxu0 %v857
        %1158 = vmatprep.subr.bf16.mxu0 %v867
        %1159 = vmatpush1.bf16.msra.mxu0 %v866
        %1160 = vmatprep.subr.bf16.mxu0 %v876
        %1161 = vmatpush1.bf16.msra.mxu0 %v875
        %1162 = vmatprep.subr.bf16.mxu0 %v885
        %1163 = vmatpush1.bf16.msra.mxu0 %v884
        %1164 = vmatprep.subr.bf16.mxu0 %v894
        %1165 = vmatpush1.bf16.msra.mxu0 %v893
        %1166 = vmatprep.subr.bf16.mxu0 %v903
        %1167 = vmatpush1.bf16.msra.mxu0 %v902
        %1168 = vmatprep.subr.bf16.mxu0 %v912
        %1169 = vmatpush1.bf16.msra.mxu0 %v911
        %1170 = vmatprep.subr.bf16.mxu0 %v921
        %1171 = vmatpush1.bf16.msra.mxu0 %v920
        %1172 = vmatprep.subr.bf16.mxu0 %v930
        %1173 = vmatpush1.bf16.msra.mxu0 %v929
        %1174 = vmatprep.subr.bf16.mxu0 %v939
        %1175 = vmatpush1.bf16.msra.mxu0 %v938
        %1176 = vmatprep.subr.bf16.mxu0 %v948
        %1177 = vmatpush1.bf16.msra.mxu0 %v947
        %1178 = vmatprep.subr.bf16.mxu0 %v957
        %1179 = vmatpush1.bf16.msra.mxu0 %v956
        %1180 = vmatprep.mubr.bf16.mxu0 %v368
        %1181 = vmatmul.mubr.bf16.gmra.mrb[0].mxu0 %v367
        %v1182 = vpop.f32.mrb[0].mxu0
        %v1183 = vadd.f32 0.0, %v1182
        %v1184 = vpop.f32.mrb[0].mxu0
        %v1185 = vadd.f32 0.0, %v1184
        %v1186 = vpop.f32.mrb[0].mxu0
        %v1187 = vpop.f32.mrb[0].mxu0
        %1188 = vdwg.mxu0
        %1189 = vmatprep.subr.bf16.mxu0 %v824
        %1190 = vmatpush1.bf16.msra.mxu0 %v823
        %1191 = vmatprep.subr.bf16.mxu0 %v833
        %1192 = vmatpush1.bf16.msra.mxu0 %v832
        %1193 = vmatprep.subr.bf16.mxu0 %v842
        %1194 = vmatpush1.bf16.msra.mxu0 %v841
        %1195 = vmatprep.subr.bf16.mxu0 %v851
        %1196 = vmatpush1.bf16.msra.mxu0 %v850
        %1197 = vmatprep.subr.bf16.mxu0 %v860
        %1198 = vmatpush1.bf16.msra.mxu0 %v859
        %1199 = vmatprep.subr.bf16.mxu0 %v869
        %1200 = vmatpush1.bf16.msra.mxu0 %v868
        %1201 = vmatprep.subr.bf16.mxu0 %v878
        %1202 = vmatpush1.bf16.msra.mxu0 %v877
        %1203 = vmatprep.subr.bf16.mxu0 %v887
        %1204 = vmatpush1.bf16.msra.mxu0 %v886
        %1205 = vmatprep.subr.bf16.mxu0 %v896
        %1206 = vmatpush1.bf16.msra.mxu0 %v895
        %1207 = vmatprep.subr.bf16.mxu0 %v905
        %1208 = vmatpush1.bf16.msra.mxu0 %v904
        %1209 = vmatprep.subr.bf16.mxu0 %v914
        %1210 = vmatpush1.bf16.msra.mxu0 %v913
        %1211 = vmatprep.subr.bf16.mxu0 %v923
        %1212 = vmatpush1.bf16.msra.mxu0 %v922
        %1213 = vmatprep.subr.bf16.mxu0 %v932
        %1214 = vmatpush1.bf16.msra.mxu0 %v931
        %1215 = vmatprep.subr.bf16.mxu0 %v941
        %1216 = vmatpush1.bf16.msra.mxu0 %v940
        %1217 = vmatprep.subr.bf16.mxu0 %v950
        %1218 = vmatpush1.bf16.msra.mxu0 %v949
        %1219 = vmatprep.subr.bf16.mxu0 %v959
        %1220 = vmatpush1.bf16.msra.mxu0 %v958
        %1221 = vmatprep.mubr.bf16.mxu0 %v368
        %1222 = vmatmul.mubr.bf16.gmra.mrb[0].mxu0 %v367
        %v1223 = vpop.f32.mrb[0].mxu0
        %v1224 = vadd.f32 0.0, %v1223
        %v1225 = vpop.f32.mrb[0].mxu0
        %v1226 = vadd.f32 0.0, %v1225
        %v1227 = vpop.f32.mrb[0].mxu0
        %v1228 = vpop.f32.mrb[0].mxu0
        %1229 = vdwg.mxu0
        %1230 = vmatprep.subr.bf16.mxu0 %v826
        %1231 = vmatpush1.bf16.msra.mxu0 %v825
        %1232 = vmatprep.subr.bf16.mxu0 %v835
        %1233 = vmatpush1.bf16.msra.mxu0 %v834
        %1234 = vmatprep.subr.bf16.mxu0 %v844
        %1235 = vmatpush1.bf16.msra.mxu0 %v843
        %1236 = vmatprep.subr.bf16.mxu0 %v853
        %1237 = vmatpush1.bf16.msra.mxu0 %v852
        %1238 = vmatprep.subr.bf16.mxu0 %v862
        %1239 = vmatpush1.bf16.msra.mxu0 %v861
        %1240 = vmatprep.subr.bf16.mxu0 %v871
        %1241 = vmatpush1.bf16.msra.mxu0 %v870
        %1242 = vmatprep.subr.bf16.mxu0 %v880
        %1243 = vmatpush1.bf16.msra.mxu0 %v879
        %1244 = vmatprep.subr.bf16.mxu0 %v889
        %1245 = vmatpush1.bf16.msra.mxu0 %v888
        %1246 = vmatprep.subr.bf16.mxu0 %v898
        %1247 = vmatpush1.bf16.msra.mxu0 %v897
        %1248 = vmatprep.subr.bf16.mxu0 %v907
        %1249 = vmatpush1.bf16.msra.mxu0 %v906
        %1250 = vmatprep.subr.bf16.mxu0 %v916
        %1251 = vmatpush1.bf16.msra.mxu0 %v915
        %1252 = vmatprep.subr.bf16.mxu0 %v925
        %1253 = vmatpush1.bf16.msra.mxu0 %v924
        %1254 = vmatprep.subr.bf16.mxu0 %v934
        %1255 = vmatpush1.bf16.msra.mxu0 %v933
        %1256 = vmatprep.subr.bf16.mxu0 %v943
        %1257 = vmatpush1.bf16.msra.mxu0 %v942
        %1258 = vmatprep.subr.bf16.mxu0 %v952
        %1259 = vmatpush1.bf16.msra.mxu0 %v951
        %1260 = vmatprep.subr.bf16.mxu0 %v961
        %1261 = vmatpush1.bf16.msra.mxu0 %v960
        %1262 = vmatprep.mubr.bf16.mxu0 %v368
        %1263 = vmatmul.mubr.bf16.gmra.mrb[0].mxu0 %v367
        %v1264 = vpop.f32.mrb[0].mxu0
        %v1265 = vadd.f32 0.0, %v1264
        %v1266 = vpop.f32.mrb[0].mxu0
        %v1267 = vadd.f32 0.0, %v1266
        %v1268 = vpop.f32.mrb[0].mxu0
        %v1269 = vpop.f32.mrb[0].mxu0
        %1270 = vdwg.mxu0
        %1271 = vmatprep.subr.bf16.mxu0 0
        %1272 = vmatpush1.bf16.msra.mxu0 %v827
        %1273 = vmatprep.subr.bf16.mxu0 0
        %1274 = vmatpush1.bf16.msra.mxu0 %v836
        %1275 = vmatprep.subr.bf16.mxu0 0
        %1276 = vmatpush1.bf16.msra.mxu0 %v845
        %1277 = vmatprep.subr.bf16.mxu0 0
        %1278 = vmatpush1.bf16.msra.mxu0 %v854
        %1279 = vmatprep.subr.bf16.mxu0 0
        %1280 = vmatpush1.bf16.msra.mxu0 %v863
        %1281 = vmatprep.subr.bf16.mxu0 0
        %1282 = vmatpush1.bf16.msra.mxu0 %v872
        %1283 = vmatprep.subr.bf16.mxu0 0
        %1284 = vmatpush1.bf16.msra.mxu0 %v881
        %1285 = vmatprep.subr.bf16.mxu0 0
        %1286 = vmatpush1.bf16.msra.mxu0 %v890
        %1287 = vmatprep.subr.bf16.mxu0 0
        %1288 = vmatpush1.bf16.msra.mxu0 %v899
        %1289 = vmatprep.subr.bf16.mxu0 0
        %1290 = vmatpush1.bf16.msra.mxu0 %v908
        %1291 = vmatprep.subr.bf16.mxu0 0
        %1292 = vmatpush1.bf16.msra.mxu0 %v917
        %1293 = vmatprep.subr.bf16.mxu0 0
        %1294 = vmatpush1.bf16.msra.mxu0 %v926
        %1295 = vmatprep.subr.bf16.mxu0 0
        %1296 = vmatpush1.bf16.msra.mxu0 %v935
        %1297 = vmatprep.subr.bf16.mxu0 0
        %1298 = vmatpush1.bf16.msra.mxu0 %v944
        %1299 = vmatprep.subr.bf16.mxu0 0
        %1300 = vmatpush1.bf16.msra.mxu0 %v953
        %1301 = vmatprep.subr.bf16.mxu0 0
        %1302 = vmatpush1.bf16.msra.mxu0 %v962
        %1303 = vmatprep.mubr.bf16.mxu0 %v368
        %1304 = vmatmul.mubr.bf16.gmra.mrb[0].mxu0 %v367
        %v1305 = vpop.f32.mrb[0].mxu0
        %v1306 = vadd.f32 0.0, %v1305
        %v1307 = vpop.f32.mrb[0].mxu0
        %v1308 = vpop.f32.mrb[0].mxu0
        %v1309 = vpop.f32.mrb[0].mxu0
        %1310 = vdwg.mxu0
        %v1311 = vpack.c.bf16 %v1142, %v1142
        %v1312 = vpack.c.bf16 %v1144, %v1144
        %v1313 = vpack.c.bf16 %v1183, %v1183
        %v1314 = vpack.c.bf16 %v1185, %v1185
        %v1315 = vpack.c.bf16 %v1224, %v1224
        %v1316 = vpack.c.bf16 %v1226, %v1226
        %v1317 = vpack.c.bf16 %v1265, %v1265
        %v1318 = vpack.c.bf16 %v1267, %v1267
        %v1319 = vpack.c.bf16 %v1306, %v1306
        %v1320 = vlaneseq
        %v1321 = vand.u32 %v1320, 127
        %v1322 = vadd.s32 %v1321, 128
        %v1323 = vadd.s32 %v1321, 256
        %v1324 = vadd.s32 %v1321, 384
        %v1325 = vadd.s32 %v1321, 512
        %v1326 = vadd.s32 %v1321, 640
        %v1327 = vadd.s32 %v1321, 768
        %v1328 = vadd.s32 %v1321, 896
        %vm1329 = vcmp.lt.s32.totalorder %v1321, 0
        %v1330 = vsub.s32 0, %v1321
        %v1331 = vsel %vm1329, %v1330, %v1321
        %v1332 = vshrl.u32 %v1331, 5
        %v1333 = vand.u32 %v1331, 31
        %v1334 = vsub.s32 0, %v1333
        %v1335 = vsel %vm1329, %v1334, %v1333
        %vm1336 = vcmp.lt.s32.totalorder %v1322, 0
        %v1337 = vsub.s32 0, %v1322
        %v1338 = vsel %vm1336, %v1337, %v1322
        %v1339 = vshrl.u32 %v1338, 5
        %v1340 = vand.u32 %v1338, 31
        %v1341 = vsub.s32 0, %v1340
        %v1342 = vsel %vm1336, %v1341, %v1340
        %vm1343 = vcmp.lt.s32.totalorder %v1323, 0
        %v1344 = vsub.s32 0, %v1323
        %v1345 = vsel %vm1343, %v1344, %v1323
        %v1346 = vshrl.u32 %v1345, 5
        %v1347 = vand.u32 %v1345, 31
        %v1348 = vsub.s32 0, %v1347
        %v1349 = vsel %vm1343, %v1348, %v1347
        %vm1350 = vcmp.lt.s32.totalorder %v1324, 0
        %v1351 = vsub.s32 0, %v1324
        %v1352 = vsel %vm1350, %v1351, %v1324
        %v1353 = vshrl.u32 %v1352, 5
        %v1354 = vand.u32 %v1352, 31
        %v1355 = vsub.s32 0, %v1354
        %v1356 = vsel %vm1350, %v1355, %v1354
        %vm1357 = vcmp.lt.s32.totalorder %v1325, 0
        %v1358 = vsub.s32 0, %v1325
        %v1359 = vsel %vm1357, %v1358, %v1325
        %v1360 = vshrl.u32 %v1359, 5
        %v1361 = vand.u32 %v1359, 31
        %v1362 = vsub.s32 0, %v1361
        %v1363 = vsel %vm1357, %v1362, %v1361
        %vm1364 = vcmp.lt.s32.totalorder %v1326, 0
        %v1365 = vsub.s32 0, %v1326
        %v1366 = vsel %vm1364, %v1365, %v1326
        %v1367 = vshrl.u32 %v1366, 5
        %v1368 = vand.u32 %v1366, 31
        %v1369 = vsub.s32 0, %v1368
        %v1370 = vsel %vm1364, %v1369, %v1368
        %vm1371 = vcmp.lt.s32.totalorder %v1327, 0
        %v1372 = vsub.s32 0, %v1327
        %v1373 = vsel %vm1371, %v1372, %v1327
        %v1374 = vshrl.u32 %v1373, 5
        %v1375 = vand.u32 %v1373, 31
        %v1376 = vsub.s32 0, %v1375
        %v1377 = vsel %vm1371, %v1376, %v1375
        %vm1378 = vcmp.lt.s32.totalorder %v1328, 0
        %v1379 = vsub.s32 0, %v1328
        %v1380 = vsel %vm1378, %v1379, %v1328
        %v1381 = vshrl.u32 %v1380, 5
        %v1382 = vand.u32 %v1380, 31
        %v1383 = vsub.s32 0, %v1382
        %v1384 = vsel %vm1378, %v1383, %v1382
        %vm1385 = vcmp.ne.s32.totalorder %v1335, 0
        %vm1386 = vcmp.ne.s32.totalorder %v1342, 0
        %vm1387 = vcmp.ne.s32.totalorder %v1349, 0
        %vm1388 = vcmp.ne.s32.totalorder %v1356, 0
        %vm1389 = vcmp.ne.s32.totalorder %v1363, 0
        %vm1390 = vcmp.ne.s32.totalorder %v1370, 0
        %vm1391 = vcmp.ne.s32.totalorder %v1377, 0
        %vm1392 = vcmp.ne.s32.totalorder %v1384, 0
        %vm1393 = vcmp.lt.s32.totalorder %v1335, 0
        %vm1394 = vcmp.lt.s32.totalorder %v1342, 0
        %vm1395 = vcmp.lt.s32.totalorder %v1349, 0
        %vm1396 = vcmp.lt.s32.totalorder %v1356, 0
        %vm1397 = vcmp.lt.s32.totalorder %v1363, 0
        %vm1398 = vcmp.lt.s32.totalorder %v1370, 0
        %vm1399 = vcmp.lt.s32.totalorder %v1377, 0
        %vm1400 = vcmp.lt.s32.totalorder %v1384, 0
        %vm1401 = vmand %vm1393, %vm1385
        %vm1402 = vmand %vm1394, %vm1386
        %vm1403 = vmand %vm1395, %vm1387
        %vm1404 = vmand %vm1396, %vm1388
        %vm1405 = vmand %vm1397, %vm1389
        %vm1406 = vmand %vm1398, %vm1390
        %vm1407 = vmand %vm1399, %vm1391
        %vm1408 = vmand %vm1400, %vm1392
        %v1409 = vadd.s32 %v1335, 32
        %v1410 = vadd.s32 %v1342, 32
        %v1411 = vadd.s32 %v1349, 32
        %v1412 = vadd.s32 %v1356, 32
        %v1413 = vadd.s32 %v1363, 32
        %v1414 = vadd.s32 %v1370, 32
        %v1415 = vadd.s32 %v1377, 32
        %v1416 = vadd.s32 %v1384, 32
        %v1417 = vsel %vm1401, %v1409, %v1335
        %v1418 = vsel %vm1402, %v1410, %v1342
        %v1419 = vsel %vm1403, %v1411, %v1349
        %v1420 = vsel %vm1404, %v1412, %v1356
        %v1421 = vsel %vm1405, %v1413, %v1363
        %v1422 = vsel %vm1406, %v1414, %v1370
        %v1423 = vsel %vm1407, %v1415, %v1377
        %v1424 = vsel %vm1408, %v1416, %v1384
        %vm1425 = vcmp.ge.s32.totalorder %v1417, 1
        %vm1426 = vcmp.ge.s32.totalorder %v1418, 1
        %vm1427 = vcmp.ge.s32.totalorder %v1419, 1
        %vm1428 = vcmp.ge.s32.totalorder %v1420, 1
        %vm1429 = vcmp.ge.s32.totalorder %v1421, 1
        %vm1430 = vcmp.ge.s32.totalorder %v1422, 1
        %vm1431 = vcmp.ge.s32.totalorder %v1423, 1
        %vm1432 = vcmp.ge.s32.totalorder %v1424, 1
        %vm1433 = vcmp.lt.s32.totalorder %v1417, 33
        %vm1434 = vcmp.lt.s32.totalorder %v1418, 33
        %vm1435 = vcmp.lt.s32.totalorder %v1419, 33
        %vm1436 = vcmp.lt.s32.totalorder %v1420, 33
        %vm1437 = vcmp.lt.s32.totalorder %v1421, 33
        %vm1438 = vcmp.lt.s32.totalorder %v1422, 33
        %vm1439 = vcmp.lt.s32.totalorder %v1423, 33
        %vm1440 = vcmp.lt.s32.totalorder %v1424, 33
        %vm1441 = vmand %vm1425, %vm1433
        %vm1442 = vmand %vm1426, %vm1434
        %vm1443 = vmand %vm1427, %vm1435
        %vm1444 = vmand %vm1428, %vm1436
        %vm1445 = vmand %vm1429, %vm1437
        %vm1446 = vmand %vm1430, %vm1438
        %vm1447 = vmand %vm1431, %vm1439
        %vm1448 = vmand %vm1432, %vm1440
        %v1449 = vsel %vm1441, 1, 0
        %v1450 = vsel %vm1442, 1, 0
        %v1451 = vsel %vm1443, 1, 0
        %v1452 = vsel %vm1444, 1, 0
        %v1453 = vsel %vm1445, 1, 0
        %v1454 = vsel %vm1446, 1, 0
        %v1455 = vsel %vm1447, 1, 0
        %v1456 = vsel %vm1448, 1, 0
        %vm1457 = vcmp.eq.s32.totalorder %v1449, 1
        %vm1458 = vcmp.eq.s32.totalorder %v1450, 1
        %vm1459 = vcmp.eq.s32.totalorder %v1451, 1
        %vm1460 = vcmp.eq.s32.totalorder %v1452, 1
        %vm1461 = vcmp.eq.s32.totalorder %v1453, 1
        %vm1462 = vcmp.eq.s32.totalorder %v1454, 1
        %vm1463 = vcmp.eq.s32.totalorder %v1455, 1
        %vm1464 = vcmp.eq.s32.totalorder %v1456, 1
        %vm1465 = vmpackc.low %vm1458, %vm1457
        %vm1466 = vmpackc.low %vm1460, %vm1459
        %vm1467 = vmpackc.low %vm1462, %vm1461
        %vm1468 = vmpackc.low %vm1464, %vm1463
        %v1469 = vsel %vm1465, 65537, 0
        %v1470 = vsel %vm1466, 65537, 0
        %v1471 = vsel %vm1467, 65537, 0
        %v1472 = vsel %vm1468, 65537, 0
        %v1473 = vlaneseq
        %v1474 = vshrl.u32 %v1473, 7
        %v1475 = vsub.s32 0, %v1474
        %v1476 = vrot.slane %v1469, %v1475
        %v1477 = vlaneseq
        %v1478 = vshrl.u32 %v1477, 7
        %v1479 = vsub.s32 4, %v1478
        %v1480 = vrot.slane %v1469, %v1479
        %v1481 = vlaneseq
        %v1482 = vshrl.u32 %v1481, 7
        %v1483 = vsub.s32 0, %v1482
        %v1484 = vrot.slane %v1470, %v1483
        %v1485 = vlaneseq
        %v1486 = vshrl.u32 %v1485, 7
        %v1487 = vsub.s32 4, %v1486
        %v1488 = vrot.slane %v1470, %v1487
        %v1489 = vlaneseq
        %v1490 = vshrl.u32 %v1489, 7
        %v1491 = vsub.s32 0, %v1490
        %v1492 = vrot.slane %v1471, %v1491
        %v1493 = vlaneseq
        %v1494 = vshrl.u32 %v1493, 7
        %v1495 = vsub.s32 4, %v1494
        %v1496 = vrot.slane %v1471, %v1495
        %v1497 = vlaneseq
        %v1498 = vshrl.u32 %v1497, 7
        %v1499 = vsub.s32 0, %v1498
        %v1500 = vrot.slane %v1472, %v1499
        %v1501 = vlaneseq
        %v1502 = vshrl.u32 %v1501, 7
        %v1503 = vsub.s32 4, %v1502
        %v1504 = vrot.slane %v1472, %v1503
        %vm1505 = vcmp.ne.s16.totalorder %v1476, 0
        %vm1506 = vcmp.ne.s16.totalorder %v1480, 0
        %vm1507 = vcmp.ne.s16.totalorder %v1484, 0
        %vm1508 = vcmp.ne.s16.totalorder %v1488, 0
        %vm1509 = vcmp.ne.s16.totalorder %v1492, 0
        %vm1510 = vcmp.ne.s16.totalorder %v1496, 0
        %vm1511 = vcmp.ne.s16.totalorder %v1500, 0
        %vm1512 = vcmp.ne.s16.totalorder %v1504, 0
        %v1513 = vsel %vm1505, %v1311, 0
        %v1514 = vsel %vm1506, %v1312, 0
        %v1515 = vsel %vm1507, %v1313, 0
        %v1516 = vsel %vm1508, %v1314, 0
        %v1517 = vsel %vm1509, %v1315, 0
        %v1518 = vsel %vm1510, %v1316, 0
        %v1519 = vsel %vm1511, %v1317, 0
        %v1520 = vsel %vm1512, %v1318, 0
        %vm1521 = vcmp.ge.s32.totalorder %v1417, 4294967295
        %vm1522 = vcmp.ge.s32.totalorder %v1418, 4294967295
        %vm1523 = vcmp.ge.s32.totalorder %v1419, 4294967295
        %vm1524 = vcmp.ge.s32.totalorder %v1420, 4294967295
        %vm1525 = vcmp.ge.s32.totalorder %v1421, 4294967295
        %vm1526 = vcmp.ge.s32.totalorder %v1422, 4294967295
        %vm1527 = vcmp.ge.s32.totalorder %v1423, 4294967295
        %vm1528 = vcmp.ge.s32.totalorder %v1424, 4294967295
        %vm1529 = vcmp.lt.s32.totalorder %v1417, 31
        %vm1530 = vcmp.lt.s32.totalorder %v1418, 31
        %vm1531 = vcmp.lt.s32.totalorder %v1419, 31
        %vm1532 = vcmp.lt.s32.totalorder %v1420, 31
        %vm1533 = vcmp.lt.s32.totalorder %v1421, 31
        %vm1534 = vcmp.lt.s32.totalorder %v1422, 31
        %vm1535 = vcmp.lt.s32.totalorder %v1423, 31
        %vm1536 = vcmp.lt.s32.totalorder %v1424, 31
        %vm1537 = vmand %vm1521, %vm1529
        %vm1538 = vmand %vm1522, %vm1530
        %vm1539 = vmand %vm1523, %vm1531
        %vm1540 = vmand %vm1524, %vm1532
        %vm1541 = vmand %vm1525, %vm1533
        %vm1542 = vmand %vm1526, %vm1534
        %vm1543 = vmand %vm1527, %vm1535
        %vm1544 = vmand %vm1528, %vm1536
        %v1545 = vsel %vm1537, 1, 0
        %v1546 = vsel %vm1538, 1, 0
        %v1547 = vsel %vm1539, 1, 0
        %v1548 = vsel %vm1540, 1, 0
        %v1549 = vsel %vm1541, 1, 0
        %v1550 = vsel %vm1542, 1, 0
        %v1551 = vsel %vm1543, 1, 0
        %v1552 = vsel %vm1544, 1, 0
        %vm1553 = vcmp.eq.s32.totalorder %v1545, 1
        %vm1554 = vcmp.eq.s32.totalorder %v1546, 1
        %vm1555 = vcmp.eq.s32.totalorder %v1547, 1
        %vm1556 = vcmp.eq.s32.totalorder %v1548, 1
        %vm1557 = vcmp.eq.s32.totalorder %v1549, 1
        %vm1558 = vcmp.eq.s32.totalorder %v1550, 1
        %vm1559 = vcmp.eq.s32.totalorder %v1551, 1
        %vm1560 = vcmp.eq.s32.totalorder %v1552, 1
        %vm1561 = vmpackc.low %vm1554, %vm1553
        %vm1562 = vmpackc.low %vm1556, %vm1555
        %vm1563 = vmpackc.low %vm1558, %vm1557
        %vm1564 = vmpackc.low %vm1560, %vm1559
        %v1565 = vsel %vm1561, 65537, 0
        %v1566 = vsel %vm1562, 65537, 0
        %v1567 = vsel %vm1563, 65537, 0
        %v1568 = vsel %vm1564, 65537, 0
        %v1569 = vlaneseq
        %v1570 = vshrl.u32 %v1569, 7
        %v1571 = vsub.s32 0, %v1570
        %v1572 = vrot.slane %v1565, %v1571
        %v1573 = vlaneseq
        %v1574 = vshrl.u32 %v1573, 7
        %v1575 = vsub.s32 4, %v1574
        %v1576 = vrot.slane %v1565, %v1575
        %v1577 = vlaneseq
        %v1578 = vshrl.u32 %v1577, 7
        %v1579 = vsub.s32 0, %v1578
        %v1580 = vrot.slane %v1566, %v1579
        %v1581 = vlaneseq
        %v1582 = vshrl.u32 %v1581, 7
        %v1583 = vsub.s32 4, %v1582
        %v1584 = vrot.slane %v1566, %v1583
        %v1585 = vlaneseq
        %v1586 = vshrl.u32 %v1585, 7
        %v1587 = vsub.s32 0, %v1586
        %v1588 = vrot.slane %v1567, %v1587
        %v1589 = vlaneseq
        %v1590 = vshrl.u32 %v1589, 7
        %v1591 = vsub.s32 4, %v1590
        %v1592 = vrot.slane %v1567, %v1591
        %v1593 = vlaneseq
        %v1594 = vshrl.u32 %v1593, 7
        %v1595 = vsub.s32 0, %v1594
        %v1596 = vrot.slane %v1568, %v1595
        %v1597 = vlaneseq
        %v1598 = vshrl.u32 %v1597, 7
        %v1599 = vsub.s32 4, %v1598
        %v1600 = vrot.slane %v1568, %v1599
        %1601 = vrot.lane.b32.xlu0 %v1572, 2
        %v1602 = vpop.permute.xlu0 %1601
        %1603 = vrot.lane.b32.xlu0 %v1576, 2
        %v1604 = vpop.permute.xlu0 %1603
        %1605 = vrot.lane.b32.xlu0 %v1580, 2
        %v1606 = vpop.permute.xlu0 %1605
        %1607 = vrot.lane.b32.xlu0 %v1584, 2
        %v1608 = vpop.permute.xlu0 %1607
        %1609 = vrot.lane.b32.xlu0 %v1588, 2
        %v1610 = vpop.permute.xlu0 %1609
        %1611 = vrot.lane.b32.xlu0 %v1592, 2
        %v1612 = vpop.permute.xlu0 %1611
        %1613 = vrot.lane.b32.xlu0 %v1596, 2
        %v1614 = vpop.permute.xlu0 %1613
        %1615 = vrot.lane.b32.xlu0 %v1600, 2
        %v1616 = vpop.permute.xlu0 %1615
        %vm1617 = vcmask 15360
        %v1618 = vsel %vm1617, %v1602, %v1604
        %v1619 = vsel %vm1617, %v1604, %v1606
        %v1620 = vsel %vm1617, %v1606, %v1608
        %v1621 = vsel %vm1617, %v1608, %v1610
        %v1622 = vsel %vm1617, %v1610, %v1612
        %v1623 = vsel %vm1617, %v1612, %v1614
        %v1624 = vsel %vm1617, %v1614, %v1616
        %vm1625 = vcmp.ne.s16.totalorder %v1602, 0
        %vm1626 = vcmp.ne.s16.totalorder %v1618, 0
        %vm1627 = vcmp.ne.s16.totalorder %v1619, 0
        %vm1628 = vcmp.ne.s16.totalorder %v1620, 0
        %vm1629 = vcmp.ne.s16.totalorder %v1621, 0
        %vm1630 = vcmp.ne.s16.totalorder %v1622, 0
        %vm1631 = vcmp.ne.s16.totalorder %v1623, 0
        %vm1632 = vcmp.ne.s16.totalorder %v1624, 0
        %vm1633 = vcmp.ne.s16.totalorder %v1616, 0
        %v1634 = vsel %vm1625, %v1311, 0
        %v1635 = vsel %vm1626, %v1312, 0
        %v1636 = vsel %vm1627, %v1313, 0
        %v1637 = vsel %vm1628, %v1314, 0
        %v1638 = vsel %vm1629, %v1315, 0
        %v1639 = vsel %vm1630, %v1316, 0
        %v1640 = vsel %vm1631, %v1317, 0
        %v1641 = vsel %vm1632, %v1318, 0
        %v1642 = vsel %vm1633, %v1319, 0
        %1643 = vrot.lane.b32.xlu0 %v1476, 32
        %v1644 = vpop.permute.xlu0 %1643
        %1645 = vrot.lane.b32.xlu0 %v1480, 32
        %v1646 = vpop.permute.xlu0 %1645
        %1647 = vrot.lane.b32.xlu0 %v1484, 32
        %v1648 = vpop.permute.xlu0 %1647
        %1649 = vrot.lane.b32.xlu0 %v1488, 32
        %v1650 = vpop.permute.xlu0 %1649
        %1651 = vrot.lane.b32.xlu0 %v1492, 32
        %v1652 = vpop.permute.xlu0 %1651
        %1653 = vrot.lane.b32.xlu0 %v1496, 32
        %v1654 = vpop.permute.xlu0 %1653
        %1655 = vrot.lane.b32.xlu0 %v1500, 32
        %v1656 = vpop.permute.xlu0 %1655
        %1657 = vrot.lane.b32.xlu0 %v1504, 32
        %v1658 = vpop.permute.xlu0 %1657
        %vm1659 = vcmask 261120
        %v1660 = vsel %vm1659, %v1644, %v1646
        %v1661 = vsel %vm1659, %v1646, %v1648
        %v1662 = vsel %vm1659, %v1648, %v1650
        %v1663 = vsel %vm1659, %v1650, %v1652
        %v1664 = vsel %vm1659, %v1652, %v1654
        %v1665 = vsel %vm1659, %v1654, %v1656
        %v1666 = vsel %vm1659, %v1656, %v1658
        %vm1667 = vcmp.ne.s16.totalorder %v1644, 0
        %vm1668 = vcmp.ne.s16.totalorder %v1660, 0
        %vm1669 = vcmp.ne.s16.totalorder %v1661, 0
        %vm1670 = vcmp.ne.s16.totalorder %v1662, 0
        %vm1671 = vcmp.ne.s16.totalorder %v1663, 0
        %vm1672 = vcmp.ne.s16.totalorder %v1664, 0
        %vm1673 = vcmp.ne.s16.totalorder %v1665, 0
        %vm1674 = vcmp.ne.s16.totalorder %v1666, 0
        %vm1675 = vcmp.ne.s16.totalorder %v1658, 0
        %v1676 = vsel %vm1667, %v1311, 0
        %v1677 = vsel %vm1668, %v1312, 0
        %v1678 = vsel %vm1669, %v1313, 0
        %v1679 = vsel %vm1670, %v1314, 0
        %v1680 = vsel %vm1671, %v1315, 0
        %v1681 = vsel %vm1672, %v1316, 0
        %v1682 = vsel %vm1673, %v1317, 0
        %v1683 = vsel %vm1674, %v1318, 0
        %v1684 = vsel %vm1675, %v1319, 0
        %1685 = vrot.lane.b32.xlu0 %v1572, 34
        %v1686 = vpop.permute.xlu0 %1685
        %1687 = vrot.lane.b32.xlu0 %v1576, 34
        %v1688 = vpop.permute.xlu0 %1687
        %1689 = vrot.lane.b32.xlu0 %v1580, 34
        %v1690 = vpop.permute.xlu0 %1689
        %1691 = vrot.lane.b32.xlu0 %v1584, 34
        %v1692 = vpop.permute.xlu0 %1691
        %1693 = vrot.lane.b32.xlu0 %v1588, 34
        %v1694 = vpop.permute.xlu0 %1693
        %1695 = vrot.lane.b32.xlu0 %v1592, 34
        %v1696 = vpop.permute.xlu0 %1695
        %1697 = vrot.lane.b32.xlu0 %v1596, 34
        %v1698 = vpop.permute.xlu0 %1697
        %1699 = vrot.lane.b32.xlu0 %v1600, 34
        %v1700 = vpop.permute.xlu0 %1699
        %vm1701 = vcmask 277504
        %v1702 = vsel %vm1701, %v1686, %v1688
        %v1703 = vsel %vm1701, %v1688, %v1690
        %v1704 = vsel %vm1701, %v1690, %v1692
        %v1705 = vsel %vm1701, %v1692, %v1694
        %v1706 = vsel %vm1701, %v1694, %v1696
        %v1707 = vsel %vm1701, %v1696, %v1698
        %v1708 = vsel %vm1701, %v1698, %v1700
        %vm1709 = vcmp.ne.s16.totalorder %v1686, 0
        %vm1710 = vcmp.ne.s16.totalorder %v1702, 0
        %vm1711 = vcmp.ne.s16.totalorder %v1703, 0
        %vm1712 = vcmp.ne.s16.totalorder %v1704, 0
        %vm1713 = vcmp.ne.s16.totalorder %v1705, 0
        %vm1714 = vcmp.ne.s16.totalorder %v1706, 0
        %vm1715 = vcmp.ne.s16.totalorder %v1707, 0
        %vm1716 = vcmp.ne.s16.totalorder %v1708, 0
        %vm1717 = vcmp.ne.s16.totalorder %v1700, 0
        %v1718 = vsel %vm1709, %v1311, 0
        %v1719 = vsel %vm1710, %v1312, 0
        %v1720 = vsel %vm1711, %v1313, 0
        %v1721 = vsel %vm1712, %v1314, 0
        %v1722 = vsel %vm1713, %v1315, 0
        %v1723 = vsel %vm1714, %v1316, 0
        %v1724 = vsel %vm1715, %v1317, 0
        %v1725 = vsel %vm1716, %v1318, 0
        %v1726 = vsel %vm1717, %v1319, 0
        %1727 = vrot.lane.b32.xlu0 %v1476, 64
        %v1728 = vpop.permute.xlu0 %1727
        %1729 = vrot.lane.b32.xlu0 %v1480, 64
        %v1730 = vpop.permute.xlu0 %1729
        %1731 = vrot.lane.b32.xlu0 %v1484, 64
        %v1732 = vpop.permute.xlu0 %1731
        %1733 = vrot.lane.b32.xlu0 %v1488, 64
        %v1734 = vpop.permute.xlu0 %1733
        %1735 = vrot.lane.b32.xlu0 %v1492, 64
        %v1736 = vpop.permute.xlu0 %1735
        %1737 = vrot.lane.b32.xlu0 %v1496, 64
        %v1738 = vpop.permute.xlu0 %1737
        %1739 = vrot.lane.b32.xlu0 %v1500, 64
        %v1740 = vpop.permute.xlu0 %1739
        %1741 = vrot.lane.b32.xlu0 %v1504, 64
        %v1742 = vpop.permute.xlu0 %1741
        %vm1743 = vcmask 523264
        %v1744 = vsel %vm1743, %v1728, %v1730
        %v1745 = vsel %vm1743, %v1730, %v1732
        %v1746 = vsel %vm1743, %v1732, %v1734
        %v1747 = vsel %vm1743, %v1734, %v1736
        %v1748 = vsel %vm1743, %v1736, %v1738
        %v1749 = vsel %vm1743, %v1738, %v1740
        %v1750 = vsel %vm1743, %v1740, %v1742
        %vm1751 = vcmp.ne.s16.totalorder %v1728, 0
        %vm1752 = vcmp.ne.s16.totalorder %v1744, 0
        %vm1753 = vcmp.ne.s16.totalorder %v1745, 0
        %vm1754 = vcmp.ne.s16.totalorder %v1746, 0
        %vm1755 = vcmp.ne.s16.totalorder %v1747, 0
        %vm1756 = vcmp.ne.s16.totalorder %v1748, 0
        %vm1757 = vcmp.ne.s16.totalorder %v1749, 0
        %vm1758 = vcmp.ne.s16.totalorder %v1750, 0
        %vm1759 = vcmp.ne.s16.totalorder %v1742, 0
        %v1760 = vsel %vm1751, %v1311, 0
        %v1761 = vsel %vm1752, %v1312, 0
        %v1762 = vsel %vm1753, %v1313, 0
        %v1763 = vsel %vm1754, %v1314, 0
        %v1764 = vsel %vm1755, %v1315, 0
        %v1765 = vsel %vm1756, %v1316, 0
        %v1766 = vsel %vm1757, %v1317, 0
        %v1767 = vsel %vm1758, %v1318, 0
        %v1768 = vsel %vm1759, %v1319, 0
        %1769 = vrot.lane.b32.xlu0 %v1572, 66
        %v1770 = vpop.permute.xlu0 %1769
        %1771 = vrot.lane.b32.xlu0 %v1576, 66
        %v1772 = vpop.permute.xlu0 %1771
        %1773 = vrot.lane.b32.xlu0 %v1580, 66
        %v1774 = vpop.permute.xlu0 %1773
        %1775 = vrot.lane.b32.xlu0 %v1584, 66
        %v1776 = vpop.permute.xlu0 %1775
        %1777 = vrot.lane.b32.xlu0 %v1588, 66
        %v1778 = vpop.permute.xlu0 %1777
        %1779 = vrot.lane.b32.xlu0 %v1592, 66
        %v1780 = vpop.permute.xlu0 %1779
        %1781 = vrot.lane.b32.xlu0 %v1596, 66
        %v1782 = vpop.permute.xlu0 %1781
        %1783 = vrot.lane.b32.xlu0 %v1600, 66
        %v1784 = vpop.permute.xlu0 %1783
        %vm1785 = vcmask 539648
        %v1786 = vsel %vm1785, %v1770, %v1772
        %v1787 = vsel %vm1785, %v1772, %v1774
        %v1788 = vsel %vm1785, %v1774, %v1776
        %v1789 = vsel %vm1785, %v1776, %v1778
        %v1790 = vsel %vm1785, %v1778, %v1780
        %v1791 = vsel %vm1785, %v1780, %v1782
        %v1792 = vsel %vm1785, %v1782, %v1784
        %vm1793 = vcmp.ne.s16.totalorder %v1770, 0
        %vm1794 = vcmp.ne.s16.totalorder %v1786, 0
        %vm1795 = vcmp.ne.s16.totalorder %v1787, 0
        %vm1796 = vcmp.ne.s16.totalorder %v1788, 0
        %vm1797 = vcmp.ne.s16.totalorder %v1789, 0
        %vm1798 = vcmp.ne.s16.totalorder %v1790, 0
        %vm1799 = vcmp.ne.s16.totalorder %v1791, 0
        %vm1800 = vcmp.ne.s16.totalorder %v1792, 0
        %vm1801 = vcmp.ne.s16.totalorder %v1784, 0
        %v1802 = vsel %vm1793, %v1311, 0
        %v1803 = vsel %vm1794, %v1312, 0
        %v1804 = vsel %vm1795, %v1313, 0
        %v1805 = vsel %vm1796, %v1314, 0
        %v1806 = vsel %vm1797, %v1315, 0
        %v1807 = vsel %vm1798, %v1316, 0
        %v1808 = vsel %vm1799, %v1317, 0
        %v1809 = vsel %vm1800, %v1318, 0
        %v1810 = vsel %vm1801, %v1319, 0
        %v1820 = vrot.slane %v1311, 6
        %v1821 = vrot.slane %v1312, 6
        %v1822 = vrot.slane %v1313, 6
        %v1823 = vrot.slane %v1314, 6
        %v1824 = vrot.slane %v1315, 6
        %v1825 = vrot.slane %v1316, 6
        %v1826 = vrot.slane %v1317, 6
        %v1827 = vrot.slane %v1318, 6
        %v1828 = vrot.slane %v1319, 6
        %1829 = vrot.lane.b32.xlu0 %v1820, 127
        %v1830 = vpop.permute.xlu0 %1829
        %1831 = vrot.lane.b32.xlu0 %v1821, 127
        %v1832 = vpop.permute.xlu0 %1831
        %1833 = vrot.lane.b32.xlu0 %v1822, 127
        %v1834 = vpop.permute.xlu0 %1833
        %1835 = vrot.lane.b32.xlu0 %v1823, 127
        %v1836 = vpop.permute.xlu0 %1835
        %1837 = vrot.lane.b32.xlu0 %v1824, 127
        %v1838 = vpop.permute.xlu0 %1837
        %1839 = vrot.lane.b32.xlu0 %v1825, 127
        %v1840 = vpop.permute.xlu0 %1839
        %1841 = vrot.lane.b32.xlu0 %v1826, 127
        %v1842 = vpop.permute.xlu0 %1841
        %1843 = vrot.lane.b32.xlu0 %v1827, 127
        %v1844 = vpop.permute.xlu0 %1843
        %1845 = vrot.lane.b32.xlu0 %v1828, 127
        %v1846 = vpop.permute.xlu0 %1845
        %vm1847 = vcmask 1039360
        %v1848 = vsel %vm1847, %v1830, %v1832
        %v1849 = vsel %vm1847, %v1832, %v1834
        %v1850 = vsel %vm1847, %v1834, %v1836
        %v1851 = vsel %vm1847, %v1836, %v1838
        %v1852 = vsel %vm1847, %v1838, %v1840
        %v1853 = vsel %vm1847, %v1840, %v1842
        %v1854 = vsel %vm1847, %v1842, %v1844
        %v1855 = vsel %vm1847, %v1844, %v1846
        %v1865 = vrot.slane %v1634, 4
        %v1866 = vrot.slane %v1635, 4
        %v1867 = vrot.slane %v1636, 4
        %v1868 = vrot.slane %v1637, 4
        %v1869 = vrot.slane %v1638, 4
        %v1870 = vrot.slane %v1639, 4
        %v1871 = vrot.slane %v1640, 4
        %v1872 = vrot.slane %v1641, 4
        %v1873 = vrot.slane %v1642, 4
        %1874 = vrot.lane.b32.xlu0 %v1865, 126
        %v1875 = vpop.permute.xlu0 %1874
        %1876 = vrot.lane.b32.xlu0 %v1866, 126
        %v1877 = vpop.permute.xlu0 %1876
        %1878 = vrot.lane.b32.xlu0 %v1867, 126
        %v1879 = vpop.permute.xlu0 %1878
        %1880 = vrot.lane.b32.xlu0 %v1868, 126
        %v1881 = vpop.permute.xlu0 %1880
        %1882 = vrot.lane.b32.xlu0 %v1869, 126
        %v1883 = vpop.permute.xlu0 %1882
        %1884 = vrot.lane.b32.xlu0 %v1870, 126
        %v1885 = vpop.permute.xlu0 %1884
        %1886 = vrot.lane.b32.xlu0 %v1871, 126
        %v1887 = vpop.permute.xlu0 %1886
        %1888 = vrot.lane.b32.xlu0 %v1872, 126
        %v1889 = vpop.permute.xlu0 %1888
        %1890 = vrot.lane.b32.xlu0 %v1873, 126
        %v1891 = vpop.permute.xlu0 %1890
        %vm1892 = vcmask 1031168
        %v1893 = vsel %vm1892, %v1875, %v1877
        %v1894 = vsel %vm1892, %v1877, %v1879
        %v1895 = vsel %vm1892, %v1879, %v1881
        %v1896 = vsel %vm1892, %v1881, %v1883
        %v1897 = vsel %vm1892, %v1883, %v1885
        %v1898 = vsel %vm1892, %v1885, %v1887
        %v1899 = vsel %vm1892, %v1887, %v1889
        %v1900 = vsel %vm1892, %v1889, %v1891
        %v1910 = vrot.slane %v1676, 2
        %v1911 = vrot.slane %v1677, 2
        %v1912 = vrot.slane %v1678, 2
        %v1913 = vrot.slane %v1679, 2
        %v1914 = vrot.slane %v1680, 2
        %v1915 = vrot.slane %v1681, 2
        %v1916 = vrot.slane %v1682, 2
        %v1917 = vrot.slane %v1683, 2
        %v1918 = vrot.slane %v1684, 2
        %1919 = vrot.lane.b32.xlu0 %v1910, 96
        %v1920 = vpop.permute.xlu0 %1919
        %1921 = vrot.lane.b32.xlu0 %v1911, 96
        %v1922 = vpop.permute.xlu0 %1921
        %1923 = vrot.lane.b32.xlu0 %v1912, 96
        %v1924 = vpop.permute.xlu0 %1923
        %1925 = vrot.lane.b32.xlu0 %v1913, 96
        %v1926 = vpop.permute.xlu0 %1925
        %1927 = vrot.lane.b32.xlu0 %v1914, 96
        %v1928 = vpop.permute.xlu0 %1927
        %1929 = vrot.lane.b32.xlu0 %v1915, 96
        %v1930 = vpop.permute.xlu0 %1929
        %1931 = vrot.lane.b32.xlu0 %v1916, 96
        %v1932 = vpop.permute.xlu0 %1931
        %1933 = vrot.lane.b32.xlu0 %v1917, 96
        %v1934 = vpop.permute.xlu0 %1933
        %1935 = vrot.lane.b32.xlu0 %v1918, 96
        %v1936 = vpop.permute.xlu0 %1935
        %vm1937 = vcmask 785408
        %v1938 = vsel %vm1937, %v1920, %v1922
        %v1939 = vsel %vm1937, %v1922, %v1924
        %v1940 = vsel %vm1937, %v1924, %v1926
        %v1941 = vsel %vm1937, %v1926, %v1928
        %v1942 = vsel %vm1937, %v1928, %v1930
        %v1943 = vsel %vm1937, %v1930, %v1932
        %v1944 = vsel %vm1937, %v1932, %v1934
        %v1945 = vsel %vm1937, %v1934, %v1936
        %1946 = vrot.lane.b32.xlu0 %v1311, 95
        %v1947 = vpop.permute.xlu0 %1946
        %1948 = vrot.lane.b32.xlu0 %v1312, 95
        %v1949 = vpop.permute.xlu0 %1948
        %1950 = vrot.lane.b32.xlu0 %v1313, 95
        %v1951 = vpop.permute.xlu0 %1950
        %1952 = vrot.lane.b32.xlu0 %v1314, 95
        %v1953 = vpop.permute.xlu0 %1952
        %1954 = vrot.lane.b32.xlu0 %v1315, 95
        %v1955 = vpop.permute.xlu0 %1954
        %1956 = vrot.lane.b32.xlu0 %v1316, 95
        %v1957 = vpop.permute.xlu0 %1956
        %1958 = vrot.lane.b32.xlu0 %v1317, 95
        %v1959 = vpop.permute.xlu0 %1958
        %1960 = vrot.lane.b32.xlu0 %v1318, 95
        %v1961 = vpop.permute.xlu0 %1960
        %1962 = vrot.lane.b32.xlu0 %v1319, 95
        %v1963 = vpop.permute.xlu0 %1962
        %vm1964 = vcmask 777216
        %v1965 = vsel %vm1964, %v1947, %v1949
        %v1966 = vsel %vm1964, %v1949, %v1951
        %v1967 = vsel %vm1964, %v1951, %v1953
        %v1968 = vsel %vm1964, %v1953, %v1955
        %v1969 = vsel %vm1964, %v1955, %v1957
        %v1970 = vsel %vm1964, %v1957, %v1959
        %v1971 = vsel %vm1964, %v1959, %v1961
        %v1972 = vsel %vm1964, %v1961, %v1963
        %v1982 = vrot.slane %v1718, 6
        %v1983 = vrot.slane %v1719, 6
        %v1984 = vrot.slane %v1720, 6
        %v1985 = vrot.slane %v1721, 6
        %v1986 = vrot.slane %v1722, 6
        %v1987 = vrot.slane %v1723, 6
        %v1988 = vrot.slane %v1724, 6
        %v1989 = vrot.slane %v1725, 6
        %v1990 = vrot.slane %v1726, 6
        %1991 = vrot.lane.b32.xlu0 %v1982, 94
        %v1992 = vpop.permute.xlu0 %1991
        %1993 = vrot.lane.b32.xlu0 %v1983, 94
        %v1994 = vpop.permute.xlu0 %1993
        %1995 = vrot.lane.b32.xlu0 %v1984, 94
        %v1996 = vpop.permute.xlu0 %1995
        %1997 = vrot.lane.b32.xlu0 %v1985, 94
        %v1998 = vpop.permute.xlu0 %1997
        %1999 = vrot.lane.b32.xlu0 %v1986, 94
        %v2000 = vpop.permute.xlu0 %1999
        %2001 = vrot.lane.b32.xlu0 %v1987, 94
        %v2002 = vpop.permute.xlu0 %2001
        %2003 = vrot.lane.b32.xlu0 %v1988, 94
        %v2004 = vpop.permute.xlu0 %2003
        %2005 = vrot.lane.b32.xlu0 %v1989, 94
        %v2006 = vpop.permute.xlu0 %2005
        %2007 = vrot.lane.b32.xlu0 %v1990, 94
        %v2008 = vpop.permute.xlu0 %2007
        %vm2009 = vcmask 769024
        %v2010 = vsel %vm2009, %v1992, %v1994
        %v2011 = vsel %vm2009, %v1994, %v1996
        %v2012 = vsel %vm2009, %v1996, %v1998
        %v2013 = vsel %vm2009, %v1998, %v2000
        %v2014 = vsel %vm2009, %v2000, %v2002
        %v2015 = vsel %vm2009, %v2002, %v2004
        %v2016 = vsel %vm2009, %v2004, %v2006
        %v2017 = vsel %vm2009, %v2006, %v2008
        %v2027 = vrot.slane %v1760, 4
        %v2028 = vrot.slane %v1761, 4
        %v2029 = vrot.slane %v1762, 4
        %v2030 = vrot.slane %v1763, 4
        %v2031 = vrot.slane %v1764, 4
        %v2032 = vrot.slane %v1765, 4
        %v2033 = vrot.slane %v1766, 4
        %v2034 = vrot.slane %v1767, 4
        %v2035 = vrot.slane %v1768, 4
        %2036 = vrot.lane.b32.xlu0 %v2027, 64
        %v2037 = vpop.permute.xlu0 %2036
        %2038 = vrot.lane.b32.xlu0 %v2028, 64
        %v2039 = vpop.permute.xlu0 %2038
        %2040 = vrot.lane.b32.xlu0 %v2029, 64
        %v2041 = vpop.permute.xlu0 %2040
        %2042 = vrot.lane.b32.xlu0 %v2030, 64
        %v2043 = vpop.permute.xlu0 %2042
        %2044 = vrot.lane.b32.xlu0 %v2031, 64
        %v2045 = vpop.permute.xlu0 %2044
        %2046 = vrot.lane.b32.xlu0 %v2032, 64
        %v2047 = vpop.permute.xlu0 %2046
        %2048 = vrot.lane.b32.xlu0 %v2033, 64
        %v2049 = vpop.permute.xlu0 %2048
        %2050 = vrot.lane.b32.xlu0 %v2034, 64
        %v2051 = vpop.permute.xlu0 %2050
        %2052 = vrot.lane.b32.xlu0 %v2035, 64
        %v2053 = vpop.permute.xlu0 %2052
        %v2054 = vsel %vm1743, %v2037, %v2039
        %v2055 = vsel %vm1743, %v2039, %v2041
        %v2056 = vsel %vm1743, %v2041, %v2043
        %v2057 = vsel %vm1743, %v2043, %v2045
        %v2058 = vsel %vm1743, %v2045, %v2047
        %v2059 = vsel %vm1743, %v2047, %v2049
        %v2060 = vsel %vm1743, %v2049, %v2051
        %v2061 = vsel %vm1743, %v2051, %v2053
        %v2062 = vrot.slane %v1311, 2
        %v2063 = vrot.slane %v1312, 2
        %v2064 = vrot.slane %v1313, 2
        %v2065 = vrot.slane %v1314, 2
        %v2066 = vrot.slane %v1315, 2
        %v2067 = vrot.slane %v1316, 2
        %v2068 = vrot.slane %v1317, 2
        %v2069 = vrot.slane %v1318, 2
        %v2070 = vrot.slane %v1319, 2
        %2071 = vrot.lane.b32.xlu0 %v2062, 63
        %v2072 = vpop.permute.xlu0 %2071
        %2073 = vrot.lane.b32.xlu0 %v2063, 63
        %v2074 = vpop.permute.xlu0 %2073
        %2075 = vrot.lane.b32.xlu0 %v2064, 63
        %v2076 = vpop.permute.xlu0 %2075
        %2077 = vrot.lane.b32.xlu0 %v2065, 63
        %v2078 = vpop.permute.xlu0 %2077
        %2079 = vrot.lane.b32.xlu0 %v2066, 63
        %v2080 = vpop.permute.xlu0 %2079
        %2081 = vrot.lane.b32.xlu0 %v2067, 63
        %v2082 = vpop.permute.xlu0 %2081
        %2083 = vrot.lane.b32.xlu0 %v2068, 63
        %v2084 = vpop.permute.xlu0 %2083
        %2085 = vrot.lane.b32.xlu0 %v2069, 63
        %v2086 = vpop.permute.xlu0 %2085
        %2087 = vrot.lane.b32.xlu0 %v2070, 63
        %v2088 = vpop.permute.xlu0 %2087
        %vm2089 = vcmask 515072
        %v2090 = vsel %vm2089, %v2072, %v2074
        %v2091 = vsel %vm2089, %v2074, %v2076
        %v2092 = vsel %vm2089, %v2076, %v2078
        %v2093 = vsel %vm2089, %v2078, %v2080
        %v2094 = vsel %vm2089, %v2080, %v2082
        %v2095 = vsel %vm2089, %v2082, %v2084
        %v2096 = vsel %vm2089, %v2084, %v2086
        %v2097 = vsel %vm2089, %v2086, %v2088
        %2107 = vrot.lane.b32.xlu0 %v1802, 62
        %v2108 = vpop.permute.xlu0 %2107
        %2109 = vrot.lane.b32.xlu0 %v1803, 62
        %v2110 = vpop.permute.xlu0 %2109
        %2111 = vrot.lane.b32.xlu0 %v1804, 62
        %v2112 = vpop.permute.xlu0 %2111
        %2113 = vrot.lane.b32.xlu0 %v1805, 62
        %v2114 = vpop.permute.xlu0 %2113
        %2115 = vrot.lane.b32.xlu0 %v1806, 62
        %v2116 = vpop.permute.xlu0 %2115
        %2117 = vrot.lane.b32.xlu0 %v1807, 62
        %v2118 = vpop.permute.xlu0 %2117
        %2119 = vrot.lane.b32.xlu0 %v1808, 62
        %v2120 = vpop.permute.xlu0 %2119
        %2121 = vrot.lane.b32.xlu0 %v1809, 62
        %v2122 = vpop.permute.xlu0 %2121
        %2123 = vrot.lane.b32.xlu0 %v1810, 62
        %v2124 = vpop.permute.xlu0 %2123
        %vm2125 = vcmask 506880
        %v2126 = vsel %vm2125, %v2108, %v2110
        %v2127 = vsel %vm2125, %v2110, %v2112
        %v2128 = vsel %vm2125, %v2112, %v2114
        %v2129 = vsel %vm2125, %v2114, %v2116
        %v2130 = vsel %vm2125, %v2116, %v2118
        %v2131 = vsel %vm2125, %v2118, %v2120
        %v2132 = vsel %vm2125, %v2120, %v2122
        %v2133 = vsel %vm2125, %v2122, %v2124
        %vm2134 = vcmask 1041408
        %v2137 = vsel %vm2134, %v1513, %v1848
        %v2140 = vsel %vm2134, %v1514, %v1849
        %v2143 = vsel %vm2134, %v1515, %v1850
        %v2146 = vsel %vm2134, %v1516, %v1851
        %v2149 = vsel %vm2134, %v1517, %v1852
        %v2152 = vsel %vm2134, %v1518, %v1853
        %v2155 = vsel %vm2134, %v1519, %v1854
        %v2158 = vsel %vm2134, %v1520, %v1855
        %vm2159 = vcmask 1043456
        %v2161 = vsel %vm2159, %v2137, %v1893
        %v2163 = vsel %vm2159, %v2140, %v1894
        %v2165 = vsel %vm2159, %v2143, %v1895
        %v2167 = vsel %vm2159, %v2146, %v1896
        %v2169 = vsel %vm2159, %v2149, %v1897
        %v2171 = vsel %vm2159, %v2152, %v1898
        %v2173 = vsel %vm2159, %v2155, %v1899
        %v2175 = vsel %vm2159, %v2158, %v1900
        %vm2176 = vcmask 1045504
        %v2178 = vsel %vm2176, %v2161, %v1938
        %v2181 = vsel %vm2176, %v2163, %v1939
        %v2184 = vsel %vm2176, %v2165, %v1940
        %v2187 = vsel %vm2176, %v2167, %v1941
        %v2190 = vsel %vm2176, %v2169, %v1942
        %v2193 = vsel %vm2176, %v2171, %v1943
        %v2196 = vsel %vm2176, %v2173, %v1944
        %v2199 = vsel %vm2176, %v2175, %v1945
        %v2203 = vsel %vm2134, %v1965, %v2010
        %v2206 = vsel %vm2134, %v1966, %v2011
        %v2209 = vsel %vm2134, %v1967, %v2012
        %v2212 = vsel %vm2134, %v1968, %v2013
        %v2215 = vsel %vm2134, %v1969, %v2014
        %v2218 = vsel %vm2134, %v1970, %v2015
        %v2221 = vsel %vm2134, %v1971, %v2016
        %v2224 = vsel %vm2134, %v1972, %v2017
        %v2226 = vsel %vm2159, %v2203, %v2054
        %v2228 = vsel %vm2159, %v2206, %v2055
        %v2230 = vsel %vm2159, %v2209, %v2056
        %v2232 = vsel %vm2159, %v2212, %v2057
        %v2234 = vsel %vm2159, %v2215, %v2058
        %v2236 = vsel %vm2159, %v2218, %v2059
        %v2238 = vsel %vm2159, %v2221, %v2060
        %v2240 = vsel %vm2159, %v2224, %v2061
        %v2242 = vsel %vm2176, %v2226, %v2090
        %v2245 = vsel %vm2176, %v2228, %v2091
        %v2248 = vsel %vm2176, %v2230, %v2092
        %v2251 = vsel %vm2176, %v2232, %v2093
        %v2254 = vsel %vm2176, %v2234, %v2094
        %v2257 = vsel %vm2176, %v2236, %v2095
        %v2260 = vsel %vm2176, %v2238, %v2096
        %v2263 = vsel %vm2176, %v2240, %v2097
        %v2265 = vld [vmem:[%s2] sm:$0xf]
        %v2266 = vld [vmem:[%s3] sm:$0xff]
        %2268 = vset.pattern.permute.xlu0 0
        %2269 = vperm.xlu0 %2268, %v2266
        %v2270 = vpop.permute.xlu0 %2269
        %vm2272 = vcmask 293888
        %v2274 = vsel %vm2272, %v2265, 0
        %v2277 = vsel %vm2134, %v2126, 0
        %v2280 = vsel %vm2134, %v2127, 0
        %v2283 = vsel %vm2134, %v2128, 0
        %v2286 = vsel %vm2134, %v2129, 0
        %v2289 = vsel %vm2134, %v2130, 0
        %v2292 = vsel %vm2134, %v2131, 0
        %v2295 = vsel %vm2134, %v2132, 0
        %v2298 = vsel %vm2134, %v2133, 0
        %2300 = vmatprep.subr.bf16.mxu0 %v2181
        %2301 = vmatpush1.bf16.msra.mxu0 %v2178
        %2302 = vmatprep.subr.bf16.mxu0 %v2245
        %2303 = vmatpush1.bf16.msra.mxu0 %v2242
        %2304 = vmatprep.subr.bf16.mxu0 %v2280
        %2305 = vmatpush1.bf16.msra.mxu0 %v2277
        %2306 = vmatprep.subr.bf16.mxu0 0
        %2307 = vmatpush1.bf16.msra.mxu0 0
        %2308 = vmatprep.subr.bf16.mxu0 0
        %2309 = vmatpush1.bf16.msra.mxu0 0
        %2310 = vmatprep.subr.bf16.mxu0 0
        %2311 = vmatpush1.bf16.msra.mxu0 0
        %2312 = vmatprep.subr.bf16.mxu0 0
        %2313 = vmatpush1.bf16.msra.mxu0 0
        %2314 = vmatprep.subr.bf16.mxu0 0
        %2315 = vmatpush1.bf16.msra.mxu0 0
        %2316 = vmatprep.subr.bf16.mxu0 0
        %2317 = vmatpush1.bf16.msra.mxu0 0
        %2318 = vmatprep.subr.bf16.mxu0 0
        %2319 = vmatpush1.bf16.msra.mxu0 0
        %2320 = vmatprep.subr.bf16.mxu0 0
        %2321 = vmatpush1.bf16.msra.mxu0 0
        %2322 = vmatprep.subr.bf16.mxu0 0
        %2323 = vmatpush1.bf16.msra.mxu0 0
        %2324 = vmatprep.subr.bf16.mxu0 0
        %2325 = vmatpush1.bf16.msra.mxu0 0
        %2326 = vmatprep.subr.bf16.mxu0 0
        %2327 = vmatpush1.bf16.msra.mxu0 0
        %2328 = vmatprep.subr.bf16.mxu0 0
        %2329 = vmatpush1.bf16.msra.mxu0 0
        %2330 = vmatprep.subr.bf16.mxu0 0
        %2331 = vmatpush1.bf16.msra.mxu0 0
        %2332 = vmatprep.mubr.bf16.mxu0 0
        %2333 = vmatmul.mubr.bf16.gmra.mrb[0].mxu0 %v2274
        %v2334 = vpop.f32.mrb[0].mxu0
        %v2335 = vadd.f32 %v2270, %v2334
        %v2336 = vpop.f32.mrb[0].mxu0
        %v2337 = vadd.f32 %v2270, %v2336
        %v2338 = vpop.f32.mrb[0].mxu0
        %v2339 = vpop.f32.mrb[0].mxu0
        %2340 = vdwg.mxu0
        %2341 = vmatprep.subr.bf16.mxu0 %v2187
        %2342 = vmatpush1.bf16.msra.mxu0 %v2184
        %2343 = vmatprep.subr.bf16.mxu0 %v2251
        %2344 = vmatpush1.bf16.msra.mxu0 %v2248
        %2345 = vmatprep.subr.bf16.mxu0 %v2286
        %2346 = vmatpush1.bf16.msra.mxu0 %v2283
        %2347 = vmatprep.subr.bf16.mxu0 0
        %2348 = vmatpush1.bf16.msra.mxu0 0
        %2349 = vmatprep.subr.bf16.mxu0 0
        %2350 = vmatpush1.bf16.msra.mxu0 0
        %2351 = vmatprep.subr.bf16.mxu0 0
        %2352 = vmatpush1.bf16.msra.mxu0 0
        %2353 = vmatprep.subr.bf16.mxu0 0
        %2354 = vmatpush1.bf16.msra.mxu0 0
        %2355 = vmatprep.subr.bf16.mxu0 0
        %2356 = vmatpush1.bf16.msra.mxu0 0
        %2357 = vmatprep.subr.bf16.mxu0 0
        %2358 = vmatpush1.bf16.msra.mxu0 0
        %2359 = vmatprep.subr.bf16.mxu0 0
        %2360 = vmatpush1.bf16.msra.mxu0 0
        %2361 = vmatprep.subr.bf16.mxu0 0
        %2362 = vmatpush1.bf16.msra.mxu0 0
        %2363 = vmatprep.subr.bf16.mxu0 0
        %2364 = vmatpush1.bf16.msra.mxu0 0
        %2365 = vmatprep.subr.bf16.mxu0 0
        %2366 = vmatpush1.bf16.msra.mxu0 0
        %2367 = vmatprep.subr.bf16.mxu0 0
        %2368 = vmatpush1.bf16.msra.mxu0 0
        %2369 = vmatprep.subr.bf16.mxu0 0
        %2370 = vmatpush1.bf16.msra.mxu0 0
        %2371 = vmatprep.subr.bf16.mxu0 0
        %2372 = vmatpush1.bf16.msra.mxu0 0
        %2373 = vmatprep.mubr.bf16.mxu0 0
        %2374 = vmatmul.mubr.bf16.gmra.mrb[0].mxu0 %v2274
        %v2375 = vpop.f32.mrb[0].mxu0
        %v2376 = vadd.f32 %v2270, %v2375
        %v2377 = vpop.f32.mrb[0].mxu0
        %v2378 = vadd.f32 %v2270, %v2377
        %v2379 = vpop.f32.mrb[0].mxu0
        %v2380 = vpop.f32.mrb[0].mxu0
        %2381 = vdwg.mxu0
        %2382 = vmatprep.subr.bf16.mxu0 %v2193
        %2383 = vmatpush1.bf16.msra.mxu0 %v2190
        %2384 = vmatprep.subr.bf16.mxu0 %v2257
        %2385 = vmatpush1.bf16.msra.mxu0 %v2254
        %2386 = vmatprep.subr.bf16.mxu0 %v2292
        %2387 = vmatpush1.bf16.msra.mxu0 %v2289
        %2388 = vmatprep.subr.bf16.mxu0 0
        %2389 = vmatpush1.bf16.msra.mxu0 0
        %2390 = vmatprep.subr.bf16.mxu0 0
        %2391 = vmatpush1.bf16.msra.mxu0 0
        %2392 = vmatprep.subr.bf16.mxu0 0
        %2393 = vmatpush1.bf16.msra.mxu0 0
        %2394 = vmatprep.subr.bf16.mxu0 0
        %2395 = vmatpush1.bf16.msra.mxu0 0
        %2396 = vmatprep.subr.bf16.mxu0 0
        %2397 = vmatpush1.bf16.msra.mxu0 0
        %2398 = vmatprep.subr.bf16.mxu0 0
        %2399 = vmatpush1.bf16.msra.mxu0 0
        %2400 = vmatprep.subr.bf16.mxu0 0
        %2401 = vmatpush1.bf16.msra.mxu0 0
        %2402 = vmatprep.subr.bf16.mxu0 0
        %2403 = vmatpush1.bf16.msra.mxu0 0
        %2404 = vmatprep.subr.bf16.mxu0 0
        %2405 = vmatpush1.bf16.msra.mxu0 0
        %2406 = vmatprep.subr.bf16.mxu0 0
        %2407 = vmatpush1.bf16.msra.mxu0 0
        %2408 = vmatprep.subr.bf16.mxu0 0
        %2409 = vmatpush1.bf16.msra.mxu0 0
        %2410 = vmatprep.subr.bf16.mxu0 0
        %2411 = vmatpush1.bf16.msra.mxu0 0
        %2412 = vmatprep.subr.bf16.mxu0 0
        %2413 = vmatpush1.bf16.msra.mxu0 0
        %2414 = vmatprep.mubr.bf16.mxu0 0
        %2415 = vmatmul.mubr.bf16.gmra.mrb[0].mxu0 %v2274
        %v2416 = vpop.f32.mrb[0].mxu0
        %v2417 = vadd.f32 %v2270, %v2416
        %v2418 = vpop.f32.mrb[0].mxu0
        %v2419 = vadd.f32 %v2270, %v2418
        %v2420 = vpop.f32.mrb[0].mxu0
        %v2421 = vpop.f32.mrb[0].mxu0
        %2422 = vdwg.mxu0
        %2423 = vmatprep.subr.bf16.mxu0 %v2199
        %2424 = vmatpush1.bf16.msra.mxu0 %v2196
        %2425 = vmatprep.subr.bf16.mxu0 %v2263
        %2426 = vmatpush1.bf16.msra.mxu0 %v2260
        %2427 = vmatprep.subr.bf16.mxu0 %v2298
        %2428 = vmatpush1.bf16.msra.mxu0 %v2295
        %2429 = vmatprep.subr.bf16.mxu0 0
        %2430 = vmatpush1.bf16.msra.mxu0 0
        %2431 = vmatprep.subr.bf16.mxu0 0
        %2432 = vmatpush1.bf16.msra.mxu0 0
        %2433 = vmatprep.subr.bf16.mxu0 0
        %2434 = vmatpush1.bf16.msra.mxu0 0
        %2435 = vmatprep.subr.bf16.mxu0 0
        %2436 = vmatpush1.bf16.msra.mxu0 0
        %2437 = vmatprep.subr.bf16.mxu0 0
        %2438 = vmatpush1.bf16.msra.mxu0 0
        %2439 = vmatprep.subr.bf16.mxu0 0
        %2440 = vmatpush1.bf16.msra.mxu0 0
        %2441 = vmatprep.subr.bf16.mxu0 0
        %2442 = vmatpush1.bf16.msra.mxu0 0
        %2443 = vmatprep.subr.bf16.mxu0 0
        %2444 = vmatpush1.bf16.msra.mxu0 0
        %2445 = vmatprep.subr.bf16.mxu0 0
        %2446 = vmatpush1.bf16.msra.mxu0 0
        %2447 = vmatprep.subr.bf16.mxu0 0
        %2448 = vmatpush1.bf16.msra.mxu0 0
        %2449 = vmatprep.subr.bf16.mxu0 0
        %2450 = vmatpush1.bf16.msra.mxu0 0
        %2451 = vmatprep.subr.bf16.mxu0 0
        %2452 = vmatpush1.bf16.msra.mxu0 0
        %2453 = vmatprep.subr.bf16.mxu0 0
        %2454 = vmatpush1.bf16.msra.mxu0 0
        %2455 = vmatprep.mubr.bf16.mxu0 0
        %2456 = vmatmul.mubr.bf16.gmra.mrb[0].mxu0 %v2274
        %v2457 = vpop.f32.mrb[0].mxu0
        %v2458 = vadd.f32 %v2270, %v2457
        %v2459 = vpop.f32.mrb[0].mxu0
        %v2460 = vadd.f32 %v2270, %v2459
        %v2461 = vpop.f32.mrb[0].mxu0
        %v2462 = vpop.f32.mrb[0].mxu0
        %2463 = vdwg.mxu0
        %2464 = vst [vmem:[%s190] sm:$0xff] %v2335
        %2465 = vst [vmem:[%s190 + $0x8] sm:$0xff] %v2337
        %2466 = vst [vmem:[%s190 + $0x10] sm:$0xff] %v2376
        %2467 = vst [vmem:[%s190 + $0x18] sm:$0xff] %v2378
        %2468 = vst [vmem:[%s190 + $0x20] sm:$0xff] %v2417
        %2469 = vst [vmem:[%s190 + $0x28] sm:$0xff] %v2419
        %2470 = vst [vmem:[%s190 + $0x30] sm:$0xff] %v2458
        %2471 = vst [vmem:[%s190 + $0x38] sm:$0xff] %v2460
        %s2472 = sand.u32 %s115, 1
        %s2473 = scalar_lea.sflag [#allocation3], %s2472
        %s2474 = sand.u32 %s115, 1
        %s2475 = smul.addr %s2474, 64
        %s2476 = scalar_lea.vmem [#allocation2], %s2475
        // Predicated region
        $region37: #{tpu_custom_call.1} parent=35 // pred_check
          %p2477 = pneg %p125
        $region38: #{tpu_custom_call.1} parent=35 // pred_check_branch
          %2479 = sbr.rel (%p2477) target = $region40
        $region39: #{tpu_custom_call.1} parent=35 // pred_region
          %s2481 = ssub.s32 1024, 1024
          %2482 = vsyncadd %s2473, %s2481
          %s2483 = smul.addr %s18, 8
          %s2484 = smul.addr %s2483, 128
          %s2485 = scalar_lea.hbm %s4, %s2484
          %s2487 = sshll.u32 %s2476, 4
          %s2488 = int_to_ptr.vmem [resolvable:$true] %s2487
          %2490 = dma.vmem_to_hbm [thread:$0]  %s2488, 1024, %s2485, %s2473
        $region40: #{tpu_custom_call.1} parent=35 // pred_fallthru
          _
      $region36: #{tpu_custom_call.1} parent=5 // pred_fallthru
        _
      %p2491 = scmp.le.s32.totalorder 2, %s13
      // Predicated region
      $region41: #{tpu_custom_call.1} parent=5 // pred_check
        %p2492 = pneg %p2491
      $region42: #{tpu_custom_call.1} parent=5 // pred_check_branch
        %2494 = sbr.rel (%p2492) target = $region44
      $region43: #{tpu_custom_call.1} parent=5 // pred_region
        %s2495 = ssub.s32 %s13, 2
        // Predicated region
        $region45: #{tpu_custom_call.1} parent=43 // pred_check
          %p2496 = pneg %p131
        $region46: #{tpu_custom_call.1} parent=43 // pred_check_branch
          %2498 = sbr.rel (%p2496) target = $region48
        $region47: #{tpu_custom_call.1} parent=43 // pred_region
          %s2499 = sand.u32 %s116, 1
          %s2500 = scalar_lea.sflag [#allocation3], %s2499
          %s2501 = sand.u32 %s116, 1
          %s2502 = smul.addr %s2501, 64
          %s2503 = scalar_lea.vmem [#allocation2], %s2502
          %2504 = dma.done %s2500, 1024
        $region48: #{tpu_custom_call.1} parent=43 // pred_fallthru
          _
      $region44: #{tpu_custom_call.1} parent=5 // pred_fallthru
        _
    $region6: #{tpu_custom_call.1} parent=1 // loop_footer
      %s17 = sadd.s32 1, %s13
    $region7: #{tpu_custom_call.1} parent=1 // loop_footer_branch
      %12 = sbr.rel target = $region3
    $region8: #{tpu_custom_call.1} parent=1 // loop_exit
      _
    %2505 = vsyncpa [#allocation3], 1
    %s2506 = scalar_lea.sflag [#allocation3], 1
    %2507 = vsyncpa %s2506, 1

</llo_original>
